<compile_context>
chip_gen: v7x
topology: tpu7x:2x2x1
jax: 0.10.0
libtpu: 0.0.40
codegen_flags: <defaults>
</compile_context>

<pallas_src>
import functools

import jax
import jax.numpy as jnp
from jax import lax
from jax.experimental import pallas as pl
from jax.experimental.pallas import tpu as pltpu


def _round_up(n, m):
    return ((n + m - 1) // m) * m


def rnn_kernel(x_ref, h0_ref, wi_ref, bi_ref, wh_ref, wd_ref, bd_ref,
               out_ref, h_scratch, xw_scratch, *, seq_len, seq_padded, unroll):
    T = x_ref.shape[0]
    t_idx = pl.program_id(1)
    nt = pl.num_programs(1)

    # Initialize the recurrent state once per batch tile (first time chunk).
    @pl.when(t_idx == 0)
    def _():
        h_scratch[...] = h0_ref[...]

    # ---- Hoisted input projection (independent of h): one MXU matmul per step,
    # written straight into an explicit f32 VMEM scratch.  No in-kernel reshape of
    # the x chunk, no big traced temporary (bounded vreg pressure).
    wi = wi_ref[...]
    bi = bi_ref[...]

    def project(t, carry):
        xw_scratch[t] = (jnp.dot(x_ref[t], wi,
                                 preferred_element_type=jnp.float32) + bi)
        return carry

    lax.fori_loop(0, T, project, 0, unroll=unroll)

    # ---- Serial recurrence: per-step critical path is one MXU pass (h @ W_h),
    # one VPU add and one EUP tanh, on an f32-carried h.
    wh = wh_ref[...]
    base_t = t_idx * T

    def step(t, h):
        pre = xw_scratch[t] + jnp.dot(h.astype(wh.dtype), wh,
                                      preferred_element_type=jnp.float32)
        h_new = jnp.tanh(pre)
        if seq_padded != seq_len:
            # Padded tail steps (zero x) must NOT update h.
            h_new = jnp.where(base_t + t < seq_len, h_new, h)
        return h_new

    h = lax.fori_loop(0, T, step, h_scratch[...], unroll=unroll)
    h_scratch[...] = h

    # ---- Epilogue: decoder + sigmoid only after the last time chunk.
    @pl.when(t_idx == nt - 1)
    def _():
        logits = (jnp.dot(h.astype(wd_ref.dtype), wd_ref[...],
                          preferred_element_type=jnp.float32) + bd_ref[...])
        out_ref[...] = jax.nn.sigmoid(logits).astype(out_ref.dtype)


def _choose_batch_tiling(batch, min_tiles=1):
    batch_p = _round_up(batch, 8)
    if batch_p <= 256:
        bb = batch_p
        # v7x has two TensorCores; expose >= min_tiles tiles on the "parallel"
        # batch axis when the batch permits so both cores get work.
        while (min_tiles > 1 and batch_p // bb < min_tiles
               and bb % 16 == 0 and bb > 8):
            bb //= 2
        return batch_p, bb
    # Prefer 256-row tiles (fills a v6e/v7x 256x256 MXU pass); fall back to 128
    # if it pads less.  (Avoids the old "batch=129 -> padded to 256" pathology:
    # that case is handled above with a single minimally-padded tile.)
    candidates = [(_round_up(batch_p, bb), bb) for bb in (256, 128)]
    bp, bb = min(candidates, key=lambda c: (c[0], -c[1]))
    return bp, bb


def _choose_time_chunk(seq, BB, dim, latent_p, out_p, x_bytes, w_bytes,
                       vmem_budget_bytes):
    # VMEM accounting (bytes); weights are single-buffered (pl.Buffered(1)).
    fixed = (dim * latent_p + latent_p * latent_p + latent_p * out_p) * w_bytes
    fixed += (latent_p + out_p) * 4          # biases (f32)
    fixed += 2 * BB * latent_p * 4           # h0 block + carried-h scratch
    fixed += 2 * BB * out_p * 4              # double-buffered output block
    per_step = 2 * BB * dim * x_bytes + BB * latent_p * 4   # 2x x-chunk + xw scratch
    avail = vmem_budget_bytes - fixed
    if avail <= per_step:
        return 1
    return int(max(1, min(seq, avail // per_step, 256)))


def rnn_forward(x, h0, w_i, b_i, w_h, w_d, b_d, *, time_chunk=None,
                use_bf16=True, bf16_recurrence=None, min_batch_tiles=1,
                vmem_budget_bytes=24 * 1024 * 1024):
    seq, batch, dim = x.shape
    latent = w_i.shape[1]
    out_dim = w_d.shape[1]

    # ---- TPU-friendly padded shapes (zero padding preserves the math). ----
    batch_p, BB = _choose_batch_tiling(batch, min_batch_tiles)
    nb = batch_p // BB
    latent_p = _round_up(latent, 128)        # lane-dense latent
    out_p = _round_up(out_dim, 128)          # lane-dense (unmasked) output stores

    # bf16 MXU operands (bf16-native MXU on v5e/v6e/v7x); accumulation and all
    # elementwise math stay f32.
    mxu_dt = jnp.bfloat16 if use_bf16 else jnp.float32
    if bf16_recurrence is None:
        bf16_recurrence = use_bf16
    wh_dt = jnp.bfloat16 if (use_bf16 and bf16_recurrence) else jnp.float32
    x_bytes = jnp.dtype(mxu_dt).itemsize

    # ---- Time chunking from a VMEM budget; pad seq to a multiple of T. ----
    if time_chunk is None:
        time_chunk = _choose_time_chunk(seq, BB, dim, latent_p, out_p,
                                        x_bytes, x_bytes, vmem_budget_bytes)
    T = int(time_chunk)
    seq_p = _round_up(seq, T)
    nt = seq_p // T
    unroll = True if T <= 8 else 8

    def pad2(a, r, c):
        return jnp.pad(a, ((0, r - a.shape[0]), (0, c - a.shape[1])))

    xp = jnp.pad(x, ((0, seq_p - seq), (0, batch_p - batch), (0, 0))).astype(mxu_dt)
    h0p = pad2(h0, batch_p, latent_p).astype(jnp.float32)
    wip = pad2(w_i, dim, latent_p).astype(mxu_dt)
    bip = pad2(b_i, 1, latent_p).astype(jnp.float32)
    whp = pad2(w_h, latent_p, latent_p).astype(wh_dt)
    wdp = pad2(w_d, latent_p, out_p).astype(mxu_dt)
    bdp = pad2(b_d, 1, out_p).astype(jnp.float32)

    # Grid-invariant operands: constant index_map, so double-buffering would only
    # double their VMEM footprint without hiding any DMA.
    invariant = pl.Buffered(1)

    kernel = functools.partial(rnn_kernel, seq_len=seq, seq_padded=seq_p,
                               unroll=unroll)

    vmem_limit = int(min(max(vmem_budget_bytes * 3 // 2, 32 * 1024 * 1024),
                         48 * 1024 * 1024))

    out_full = pl.pallas_call(
        kernel,
        out_shape=jax.ShapeDtypeStruct((batch_p, out_p), jnp.float32),
        grid_spec=pltpu.PrefetchScalarGridSpec(
            num_scalar_prefetch=0,
            grid=(nb, nt),
            in_specs=[
                pl.BlockSpec((T, BB, dim), lambda b, t: (t, b, 0)),   # x chunk (streamed)
                pl.BlockSpec((BB, latent_p), lambda b, t: (b, 0),
                             pipeline_mode=invariant),                # h0
                pl.BlockSpec((dim, latent_p), lambda b, t: (0, 0),
                             pipeline_mode=invariant),                # W_i
                pl.BlockSpec((1, latent_p), lambda b, t: (0, 0),
                             pipeline_mode=invariant),                # b_i
                pl.BlockSpec((latent_p, latent_p), lambda b, t: (0, 0),
                             pipeline_mode=invariant),                # W_h
                pl.BlockSpec((latent_p, out_p), lambda b, t: (0, 0),
                             pipeline_mode=invariant),                # W_d
                pl.BlockSpec((1, out_p), lambda b, t: (0, 0),
                             pipeline_mode=invariant),                # b_d
            ],
            out_specs=pl.BlockSpec((BB, out_p), lambda b, t: (b, 0)),
            scratch_shapes=[
                pltpu.VMEM((BB, latent_p), jnp.float32),      # carried h (f32)
                pltpu.VMEM((T, BB, latent_p), jnp.float32),   # hoisted x@W_i + b_i
            ],
        ),
        compiler_params=pltpu.CompilerParams(
            dimension_semantics=("parallel", "arbitrary"),
            vmem_limit_bytes=vmem_limit),
    )(xp, h0p, wip, bip, whp, wdp, bdp)

    return out_full[:batch, :out_dim]


def _uniform_init(key, shape, fan_in):
    bound = 1.0 / jnp.sqrt(jnp.float32(fan_in))
    return jax.random.uniform(key, shape, jnp.float32, -bound, bound)


def reference_forward(x, h, w_i, b_i, w_h, w_d, b_d):
    # Pure-JAX reference mirroring the PyTorch module (f32 throughout).
    seq = x.shape[0]
    for t in range(seq):
        h = jnp.tanh(x[t] @ w_i + b_i + h @ w_h)
    return jax.nn.sigmoid(h @ w_d + b_d)


if __name__ == "__main__":
    seq, batch, dim, latent, out_dim = 8, 2, 4, 32, 8

    key = jax.random.PRNGKey(0)
    kx, k1, k2, k3, k4, k5 = jax.random.split(key, 6)

    x = jax.random.normal(kx, (seq, batch, dim), jnp.float32)
    h0 = jnp.zeros((batch, latent), jnp.float32)

    # Deterministic parameter init (PyTorch Linear-style uniform bounds).
    w_i = _uniform_init(k1, (dim, latent), dim)          # lin_i.weight^T
    b_i = _uniform_init(k2, (1, latent), dim)            # lin_i.bias
    w_h = _uniform_init(k3, (latent, latent), latent)    # lin_h.weight^T (no bias)
    w_d = _uniform_init(k4, (latent, out_dim), latent)   # lin_d.weight^T
    b_d = _uniform_init(k5, (1, out_dim), latent)        # lin_d.bias

    ref = reference_forward(x, h0, w_i, b_i[0], w_h, w_d, b_d[0])

    # 1) f32 path, auto time chunk (T == seq, single chunk).
    out_a = jax.block_until_ready(
        rnn_forward(x, h0, w_i, b_i, w_h, w_d, b_d, use_bf16=False))
    assert out_a.shape == (batch, out_dim)
    assert jnp.allclose(out_a, ref, atol=1e-3, rtol=1e-3)

    # 2) f32 path, time_chunk=3 (seq padded 8 -> 9; exercises the masked padded
    #    steps and the multi-chunk carried state).
    out_b = jax.block_until_ready(
        rnn_forward(x, h0, w_i, b_i, w_h, w_d, b_d,
                    time_chunk=3, use_bf16=False))
    assert out_b.shape == (batch, out_dim)
    assert jnp.allclose(out_b, ref, atol=1e-3, rtol=1e-3)

    # 3) bf16-operand MXU path (f32 accumulation / elementwise), multi-chunk.
    out_c = jax.block_until_ready(
        rnn_forward(x, h0, w_i, b_i, w_h, w_d, b_d,
                    time_chunk=4, use_bf16=True))
    assert out_c.shape == (batch, out_dim)
    assert jnp.allclose(out_c, ref, atol=2e-2)

    print("KERNEL_OK")
</pallas_src>

<mosaic_0001>
module attributes {stable_mosaic.version = 11 : i64} {
  func.func @rnn_kernel(%arg0: i32, %arg1: i32, %arg2: memref<8x8x4xf32, #tpu.memory_space<vmem>>, %arg3: memref<8x128xf32, #tpu.memory_space<vmem>>, %arg4: memref<4x128xf32, #tpu.memory_space<vmem>>, %arg5: memref<1x128xf32, #tpu.memory_space<vmem>>, %arg6: memref<128x128xf32, #tpu.memory_space<vmem>>, %arg7: memref<128x128xf32, #tpu.memory_space<vmem>>, %arg8: memref<1x128xf32, #tpu.memory_space<vmem>>, %arg9: memref<8x128xf32, #tpu.memory_space<vmem>>, %arg10: memref<8x128xf32, #tpu.memory_space<vmem>>, %arg11: memref<8x8x128xf32, #tpu.memory_space<vmem>>) attributes {dimension_semantics = [#tpu.dimension_semantics<parallel>, #tpu.dimension_semantics<arbitrary>], iteration_bounds = array<i64: 1, 1>, scalar_prefetch = 0 : i64, scratch_operands = 2 : i64, tpu.core_type = #tpu.core_type<tc>, window_params = [{transform_indices = @transform_0, window_bounds = array<i64: 8, 8, 4>}, {pipeline_mode = #tpu.pipeline_mode<synchronous>, transform_indices = @transform_1, window_bounds = array<i64: 8, 128>}, {pipeline_mode = #tpu.pipeline_mode<synchronous>, transform_indices = @transform_2, window_bounds = array<i64: 4, 128>}, {pipeline_mode = #tpu.pipeline_mode<synchronous>, transform_indices = @transform_3, window_bounds = array<i64: 1, 128>}, {pipeline_mode = #tpu.pipeline_mode<synchronous>, transform_indices = @transform_4, window_bounds = array<i64: 128, 128>}, {pipeline_mode = #tpu.pipeline_mode<synchronous>, transform_indices = @transform_5, window_bounds = array<i64: 128, 128>}, {pipeline_mode = #tpu.pipeline_mode<synchronous>, transform_indices = @transform_6, window_bounds = array<i64: 1, 128>}, {transform_indices = @transform_7, window_bounds = array<i64: 8, 128>}]} {
    %c0_i32 = arith.constant 0 : i32
    %0 = arith.cmpi eq, %arg1, %c0_i32 : i32
    %1 = arith.extui %0 : i1 to i32
    %c0_i32_0 = arith.constant 0 : i32
    %2 = arith.cmpi ne, %1, %c0_i32_0 : i32
    scf.if %2 {
      %c0_85 = arith.constant 0 : index
      %c0_86 = arith.constant 0 : index
      %139 = vector.load %arg3[%c0_85, %c0_86] : memref<8x128xf32, #tpu.memory_space<vmem>>, vector<8x128xf32>
      %c0_87 = arith.constant 0 : index
      %c0_88 = arith.constant 0 : index
      %140 = vector.load %arg10[%c0_87, %c0_88] : memref<8x128xf32, #tpu.memory_space<vmem>>, vector<8x128xf32>
      tpu.vector_store %arg10[%c0_87, %c0_88], %139 {strides = array<i32>} : memref<8x128xf32, #tpu.memory_space<vmem>>, vector<8x128xf32>,
    } else {
    }
    %c0 = arith.constant 0 : index
    %c0_1 = arith.constant 0 : index
    %3 = vector.load %arg4[%c0, %c0_1] : memref<4x128xf32, #tpu.memory_space<vmem>>, vector<4x128xf32>
    %c0_2 = arith.constant 0 : index
    %c0_3 = arith.constant 0 : index
    %4 = vector.load %arg5[%c0_2, %c0_3] : memref<1x128xf32, #tpu.memory_space<vmem>>, vector<1x128xf32>
    %c0_i32_4 = arith.constant 0 : i32
    %5 = arith.index_cast %c0_i32_4 : i32 to index
    %c0_5 = arith.constant 0 : index
    %c0_6 = arith.constant 0 : index
    %6 = vector.load %arg2[%5, %c0_5, %c0_6] : memref<8x8x4xf32, #tpu.memory_space<vmem>>, vector<1x8x4xf32>
    %7 = vector.shape_cast %6 : vector<1x8x4xf32> to vector<8x4xf32>
    %cst = arith.constant dense<0.000000e+00> : vector<8x128xf32>
    %8 = tpu.matmul %7, %3, %cst {dimension_numbers = #tpu.dot_dimension_numbers<[1], [0], [0], [1], [0, 0, 1, 1], [], []>} : vector<8x4xf32>, vector<4x128xf32>, vector<8x128xf32> -> vector<8x128xf32>
    %9 = vector.broadcast %4 : vector<1x128xf32> to vector<8x128xf32>
    %10 = arith.addf %8, %9 : vector<8x128xf32>
    %11 = arith.index_cast %c0_i32_4 : i32 to index
    %c0_7 = arith.constant 0 : index
    %c0_8 = arith.constant 0 : index
    %12 = vector.load %arg11[%11, %c0_7, %c0_8] : memref<8x8x128xf32, #tpu.memory_space<vmem>>, vector<1x8x128xf32>
    %13 = vector.shape_cast %12 : vector<1x8x128xf32> to vector<8x128xf32>
    %14 = vector.shape_cast %10 : vector<8x128xf32> to vector<1x8x128xf32>
    tpu.vector_store %arg11[%11, %c0_7, %c0_8], %14 {strides = array<i32>} : memref<8x8x128xf32, #tpu.memory_space<vmem>>, vector<1x8x128xf32>,
    %c1_i32 = arith.constant 1 : i32
    %15 = arith.index_cast %c1_i32 : i32 to index
    %c0_9 = arith.constant 0 : index
    %c0_10 = arith.constant 0 : index
    %16 = vector.load %arg2[%15, %c0_9, %c0_10] : memref<8x8x4xf32, #tpu.memory_space<vmem>>, vector<1x8x4xf32>
    %17 = vector.shape_cast %16 : vector<1x8x4xf32> to vector<8x4xf32>
    %cst_11 = arith.constant dense<0.000000e+00> : vector<8x128xf32>
    %18 = tpu.matmul %17, %3, %cst_11 {dimension_numbers = #tpu.dot_dimension_numbers<[1], [0], [0], [1], [0, 0, 1, 1], [], []>} : vector<8x4xf32>, vector<4x128xf32>, vector<8x128xf32> -> vector<8x128xf32>
    %19 = vector.broadcast %4 : vector<1x128xf32> to vector<8x128xf32>
    %20 = arith.addf %18, %19 : vector<8x128xf32>
    %21 = arith.index_cast %c1_i32 : i32 to index
    %c0_12 = arith.constant 0 : index
    %c0_13 = arith.constant 0 : index
    %22 = vector.load %arg11[%21, %c0_12, %c0_13] : memref<8x8x128xf32, #tpu.memory_space<vmem>>, vector<1x8x128xf32>
    %23 = vector.shape_cast %22 : vector<1x8x128xf32> to vector<8x128xf32>
    %24 = vector.shape_cast %20 : vector<8x128xf32> to vector<1x8x128xf32>
    tpu.vector_store %arg11[%21, %c0_12, %c0_13], %24 {strides = array<i32>} : memref<8x8x128xf32, #tpu.memory_space<vmem>>, vector<1x8x128xf32>,
    %c2_i32 = arith.constant 2 : i32
    %25 = arith.index_cast %c2_i32 : i32 to index
    %c0_14 = arith.constant 0 : index
    %c0_15 = arith.constant 0 : index
    %26 = vector.load %arg2[%25, %c0_14, %c0_15] : memref<8x8x4xf32, #tpu.memory_space<vmem>>, vector<1x8x4xf32>
    %27 = vector.shape_cast %26 : vector<1x8x4xf32> to vector<8x4xf32>
    %cst_16 = arith.constant dense<0.000000e+00> : vector<8x128xf32>
    %28 = tpu.matmul %27, %3, %cst_16 {dimension_numbers = #tpu.dot_dimension_numbers<[1], [0], [0], [1], [0, 0, 1, 1], [], []>} : vector<8x4xf32>, vector<4x128xf32>, vector<8x128xf32> -> vector<8x128xf32>
    %29 = vector.broadcast %4 : vector<1x128xf32> to vector<8x128xf32>
    %30 = arith.addf %28, %29 : vector<8x128xf32>
    %31 = arith.index_cast %c2_i32 : i32 to index
    %c0_17 = arith.constant 0 : index
    %c0_18 = arith.constant 0 : index
    %32 = vector.load %arg11[%31, %c0_17, %c0_18] : memref<8x8x128xf32, #tpu.memory_space<vmem>>, vector<1x8x128xf32>
    %33 = vector.shape_cast %32 : vector<1x8x128xf32> to vector<8x128xf32>
    %34 = vector.shape_cast %30 : vector<8x128xf32> to vector<1x8x128xf32>
    tpu.vector_store %arg11[%31, %c0_17, %c0_18], %34 {strides = array<i32>} : memref<8x8x128xf32, #tpu.memory_space<vmem>>, vector<1x8x128xf32>,
    %c3_i32 = arith.constant 3 : i32
    %35 = arith.index_cast %c3_i32 : i32 to index
    %c0_19 = arith.constant 0 : index
    %c0_20 = arith.constant 0 : index
    %36 = vector.load %arg2[%35, %c0_19, %c0_20] : memref<8x8x4xf32, #tpu.memory_space<vmem>>, vector<1x8x4xf32>
    %37 = vector.shape_cast %36 : vector<1x8x4xf32> to vector<8x4xf32>
    %cst_21 = arith.constant dense<0.000000e+00> : vector<8x128xf32>
    %38 = tpu.matmul %37, %3, %cst_21 {dimension_numbers = #tpu.dot_dimension_numbers<[1], [0], [0], [1], [0, 0, 1, 1], [], []>} : vector<8x4xf32>, vector<4x128xf32>, vector<8x128xf32> -> vector<8x128xf32>
    %39 = vector.broadcast %4 : vector<1x128xf32> to vector<8x128xf32>
    %40 = arith.addf %38, %39 : vector<8x128xf32>
    %41 = arith.index_cast %c3_i32 : i32 to index
    %c0_22 = arith.constant 0 : index
    %c0_23 = arith.constant 0 : index
    %42 = vector.load %arg11[%41, %c0_22, %c0_23] : memref<8x8x128xf32, #tpu.memory_space<vmem>>, vector<1x8x128xf32>
    %43 = vector.shape_cast %42 : vector<1x8x128xf32> to vector<8x128xf32>
    %44 = vector.shape_cast %40 : vector<8x128xf32> to vector<1x8x128xf32>
    tpu.vector_store %arg11[%41, %c0_22, %c0_23], %44 {strides = array<i32>} : memref<8x8x128xf32, #tpu.memory_space<vmem>>, vector<1x8x128xf32>,
    %c4_i32 = arith.constant 4 : i32
    %45 = arith.index_cast %c4_i32 : i32 to index
    %c0_24 = arith.constant 0 : index
    %c0_25 = arith.constant 0 : index
    %46 = vector.load %arg2[%45, %c0_24, %c0_25] : memref<8x8x4xf32, #tpu.memory_space<vmem>>, vector<1x8x4xf32>
    %47 = vector.shape_cast %46 : vector<1x8x4xf32> to vector<8x4xf32>
    %cst_26 = arith.constant dense<0.000000e+00> : vector<8x128xf32>
    %48 = tpu.matmul %47, %3, %cst_26 {dimension_numbers = #tpu.dot_dimension_numbers<[1], [0], [0], [1], [0, 0, 1, 1], [], []>} : vector<8x4xf32>, vector<4x128xf32>, vector<8x128xf32> -> vector<8x128xf32>
    %49 = vector.broadcast %4 : vector<1x128xf32> to vector<8x128xf32>
    %50 = arith.addf %48, %49 : vector<8x128xf32>
    %51 = arith.index_cast %c4_i32 : i32 to index
    %c0_27 = arith.constant 0 : index
    %c0_28 = arith.constant 0 : index
    %52 = vector.load %arg11[%51, %c0_27, %c0_28] : memref<8x8x128xf32, #tpu.memory_space<vmem>>, vector<1x8x128xf32>
    %53 = vector.shape_cast %52 : vector<1x8x128xf32> to vector<8x128xf32>
    %54 = vector.shape_cast %50 : vector<8x128xf32> to vector<1x8x128xf32>
    tpu.vector_store %arg11[%51, %c0_27, %c0_28], %54 {strides = array<i32>} : memref<8x8x128xf32, #tpu.memory_space<vmem>>, vector<1x8x128xf32>,
    %c5_i32 = arith.constant 5 : i32
    %55 = arith.index_cast %c5_i32 : i32 to index
    %c0_29 = arith.constant 0 : index
    %c0_30 = arith.constant 0 : index
    %56 = vector.load %arg2[%55, %c0_29, %c0_30] : memref<8x8x4xf32, #tpu.memory_space<vmem>>, vector<1x8x4xf32>
    %57 = vector.shape_cast %56 : vector<1x8x4xf32> to vector<8x4xf32>
    %cst_31 = arith.constant dense<0.000000e+00> : vector<8x128xf32>
    %58 = tpu.matmul %57, %3, %cst_31 {dimension_numbers = #tpu.dot_dimension_numbers<[1], [0], [0], [1], [0, 0, 1, 1], [], []>} : vector<8x4xf32>, vector<4x128xf32>, vector<8x128xf32> -> vector<8x128xf32>
    %59 = vector.broadcast %4 : vector<1x128xf32> to vector<8x128xf32>
    %60 = arith.addf %58, %59 : vector<8x128xf32>
    %61 = arith.index_cast %c5_i32 : i32 to index
    %c0_32 = arith.constant 0 : index
    %c0_33 = arith.constant 0 : index
    %62 = vector.load %arg11[%61, %c0_32, %c0_33] : memref<8x8x128xf32, #tpu.memory_space<vmem>>, vector<1x8x128xf32>
    %63 = vector.shape_cast %62 : vector<1x8x128xf32> to vector<8x128xf32>
    %64 = vector.shape_cast %60 : vector<8x128xf32> to vector<1x8x128xf32>
    tpu.vector_store %arg11[%61, %c0_32, %c0_33], %64 {strides = array<i32>} : memref<8x8x128xf32, #tpu.memory_space<vmem>>, vector<1x8x128xf32>,
    %c6_i32 = arith.constant 6 : i32
    %65 = arith.index_cast %c6_i32 : i32 to index
    %c0_34 = arith.constant 0 : index
    %c0_35 = arith.constant 0 : index
    %66 = vector.load %arg2[%65, %c0_34, %c0_35] : memref<8x8x4xf32, #tpu.memory_space<vmem>>, vector<1x8x4xf32>
    %67 = vector.shape_cast %66 : vector<1x8x4xf32> to vector<8x4xf32>
    %cst_36 = arith.constant dense<0.000000e+00> : vector<8x128xf32>
    %68 = tpu.matmul %67, %3, %cst_36 {dimension_numbers = #tpu.dot_dimension_numbers<[1], [0], [0], [1], [0, 0, 1, 1], [], []>} : vector<8x4xf32>, vector<4x128xf32>, vector<8x128xf32> -> vector<8x128xf32>
    %69 = vector.broadcast %4 : vector<1x128xf32> to vector<8x128xf32>
    %70 = arith.addf %68, %69 : vector<8x128xf32>
    %71 = arith.index_cast %c6_i32 : i32 to index
    %c0_37 = arith.constant 0 : index
    %c0_38 = arith.constant 0 : index
    %72 = vector.load %arg11[%71, %c0_37, %c0_38] : memref<8x8x128xf32, #tpu.memory_space<vmem>>, vector<1x8x128xf32>
    %73 = vector.shape_cast %72 : vector<1x8x128xf32> to vector<8x128xf32>
    %74 = vector.shape_cast %70 : vector<8x128xf32> to vector<1x8x128xf32>
    tpu.vector_store %arg11[%71, %c0_37, %c0_38], %74 {strides = array<i32>} : memref<8x8x128xf32, #tpu.memory_space<vmem>>, vector<1x8x128xf32>,
    %c7_i32 = arith.constant 7 : i32
    %75 = arith.index_cast %c7_i32 : i32 to index
    %c0_39 = arith.constant 0 : index
    %c0_40 = arith.constant 0 : index
    %76 = vector.load %arg2[%75, %c0_39, %c0_40] : memref<8x8x4xf32, #tpu.memory_space<vmem>>, vector<1x8x4xf32>
    %77 = vector.shape_cast %76 : vector<1x8x4xf32> to vector<8x4xf32>
    %cst_41 = arith.constant dense<0.000000e+00> : vector<8x128xf32>
    %78 = tpu.matmul %77, %3, %cst_41 {dimension_numbers = #tpu.dot_dimension_numbers<[1], [0], [0], [1], [0, 0, 1, 1], [], []>} : vector<8x4xf32>, vector<4x128xf32>, vector<8x128xf32> -> vector<8x128xf32>
    %79 = vector.broadcast %4 : vector<1x128xf32> to vector<8x128xf32>
    %80 = arith.addf %78, %79 : vector<8x128xf32>
    %81 = arith.index_cast %c7_i32 : i32 to index
    %c0_42 = arith.constant 0 : index
    %c0_43 = arith.constant 0 : index
    %82 = vector.load %arg11[%81, %c0_42, %c0_43] : memref<8x8x128xf32, #tpu.memory_space<vmem>>, vector<1x8x128xf32>
    %83 = vector.shape_cast %82 : vector<1x8x128xf32> to vector<8x128xf32>
    %84 = vector.shape_cast %80 : vector<8x128xf32> to vector<1x8x128xf32>
    tpu.vector_store %arg11[%81, %c0_42, %c0_43], %84 {strides = array<i32>} : memref<8x8x128xf32, #tpu.memory_space<vmem>>, vector<1x8x128xf32>,
    %c8_i32 = arith.constant 8 : i32
    %c0_44 = arith.constant 0 : index
    %c0_45 = arith.constant 0 : index
    %85 = vector.load %arg6[%c0_44, %c0_45] : memref<128x128xf32, #tpu.memory_space<vmem>>, vector<128x128xf32>
    %c0_46 = arith.constant 0 : index
    %c0_47 = arith.constant 0 : index
    %86 = vector.load %arg10[%c0_46, %c0_47] : memref<8x128xf32, #tpu.memory_space<vmem>>, vector<8x128xf32>
    %c0_i32_48 = arith.constant 0 : i32
    %87 = arith.index_cast %c0_i32_48 : i32 to index
    %c0_49 = arith.constant 0 : index
    %c0_50 = arith.constant 0 : index
    %88 = vector.load %arg11[%87, %c0_49, %c0_50] : memref<8x8x128xf32, #tpu.memory_space<vmem>>, vector<1x8x128xf32>
    %89 = vector.shape_cast %88 : vector<1x8x128xf32> to vector<8x128xf32>
    %cst_51 = arith.constant dense<0.000000e+00> : vector<8x128xf32>
    %90 = tpu.matmul %86, %85, %cst_51 {dimension_numbers = #tpu.dot_dimension_numbers<[1], [0], [0], [1], [0, 0, 1, 1], [], []>} : vector<8x128xf32>, vector<128x128xf32>, vector<8x128xf32> -> vector<8x128xf32>
    %91 = arith.addf %89, %90 : vector<8x128xf32>
    %92 = math.tanh %91 : vector<8x128xf32>
    %c1_i32_52 = arith.constant 1 : i32
    %93 = arith.index_cast %c1_i32_52 : i32 to index
    %c0_53 = arith.constant 0 : index
    %c0_54 = arith.constant 0 : index
    %94 = vector.load %arg11[%93, %c0_53, %c0_54] : memref<8x8x128xf32, #tpu.memory_space<vmem>>, vector<1x8x128xf32>
    %95 = vector.shape_cast %94 : vector<1x8x128xf32> to vector<8x128xf32>
    %cst_55 = arith.constant dense<0.000000e+00> : vector<8x128xf32>
    %96 = tpu.matmul %92, %85, %cst_55 {dimension_numbers = #tpu.dot_dimension_numbers<[1], [0], [0], [1], [0, 0, 1, 1], [], []>} : vector<8x128xf32>, vector<128x128xf32>, vector<8x128xf32> -> vector<8x128xf32>
    %97 = arith.addf %95, %96 : vector<8x128xf32>
    %98 = math.tanh %97 : vector<8x128xf32>
    %c2_i32_56 = arith.constant 2 : i32
    %99 = arith.index_cast %c2_i32_56 : i32 to index
    %c0_57 = arith.constant 0 : index
    %c0_58 = arith.constant 0 : index
    %100 = vector.load %arg11[%99, %c0_57, %c0_58] : memref<8x8x128xf32, #tpu.memory_space<vmem>>, vector<1x8x128xf32>
    %101 = vector.shape_cast %100 : vector<1x8x128xf32> to vector<8x128xf32>
    %cst_59 = arith.constant dense<0.000000e+00> : vector<8x128xf32>
    %102 = tpu.matmul %98, %85, %cst_59 {dimension_numbers = #tpu.dot_dimension_numbers<[1], [0], [0], [1], [0, 0, 1, 1], [], []>} : vector<8x128xf32>, vector<128x128xf32>, vector<8x128xf32> -> vector<8x128xf32>
    %103 = arith.addf %101, %102 : vector<8x128xf32>
    %104 = math.tanh %103 : vector<8x128xf32>
    %c3_i32_60 = arith.constant 3 : i32
    %105 = arith.index_cast %c3_i32_60 : i32 to index
    %c0_61 = arith.constant 0 : index
    %c0_62 = arith.constant 0 : index
    %106 = vector.load %arg11[%105, %c0_61, %c0_62] : memref<8x8x128xf32, #tpu.memory_space<vmem>>, vector<1x8x128xf32>
    %107 = vector.shape_cast %106 : vector<1x8x128xf32> to vector<8x128xf32>
    %cst_63 = arith.constant dense<0.000000e+00> : vector<8x128xf32>
    %108 = tpu.matmul %104, %85, %cst_63 {dimension_numbers = #tpu.dot_dimension_numbers<[1], [0], [0], [1], [0, 0, 1, 1], [], []>} : vector<8x128xf32>, vector<128x128xf32>, vector<8x128xf32> -> vector<8x128xf32>
    %109 = arith.addf %107, %108 : vector<8x128xf32>
    %110 = math.tanh %109 : vector<8x128xf32>
    %c4_i32_64 = arith.constant 4 : i32
    %111 = arith.index_cast %c4_i32_64 : i32 to index
    %c0_65 = arith.constant 0 : index
    %c0_66 = arith.constant 0 : index
    %112 = vector.load %arg11[%111, %c0_65, %c0_66] : memref<8x8x128xf32, #tpu.memory_space<vmem>>, vector<1x8x128xf32>
    %113 = vector.shape_cast %112 : vector<1x8x128xf32> to vector<8x128xf32>
    %cst_67 = arith.constant dense<0.000000e+00> : vector<8x128xf32>
    %114 = tpu.matmul %110, %85, %cst_67 {dimension_numbers = #tpu.dot_dimension_numbers<[1], [0], [0], [1], [0, 0, 1, 1], [], []>} : vector<8x128xf32>, vector<128x128xf32>, vector<8x128xf32> -> vector<8x128xf32>
    %115 = arith.addf %113, %114 : vector<8x128xf32>
    %116 = math.tanh %115 : vector<8x128xf32>
    %c5_i32_68 = arith.constant 5 : i32
    %117 = arith.index_cast %c5_i32_68 : i32 to index
    %c0_69 = arith.constant 0 : index
    %c0_70 = arith.constant 0 : index
    %118 = vector.load %arg11[%117, %c0_69, %c0_70] : memref<8x8x128xf32, #tpu.memory_space<vmem>>, vector<1x8x128xf32>
    %119 = vector.shape_cast %118 : vector<1x8x128xf32> to vector<8x128xf32>
    %cst_71 = arith.constant dense<0.000000e+00> : vector<8x128xf32>
    %120 = tpu.matmul %116, %85, %cst_71 {dimension_numbers = #tpu.dot_dimension_numbers<[1], [0], [0], [1], [0, 0, 1, 1], [], []>} : vector<8x128xf32>, vector<128x128xf32>, vector<8x128xf32> -> vector<8x128xf32>
    %121 = arith.addf %119, %120 : vector<8x128xf32>
    %122 = math.tanh %121 : vector<8x128xf32>
    %c6_i32_72 = arith.constant 6 : i32
    %123 = arith.index_cast %c6_i32_72 : i32 to index
    %c0_73 = arith.constant 0 : index
    %c0_74 = arith.constant 0 : index
    %124 = vector.load %arg11[%123, %c0_73, %c0_74] : memref<8x8x128xf32, #tpu.memory_space<vmem>>, vector<1x8x128xf32>
    %125 = vector.shape_cast %124 : vector<1x8x128xf32> to vector<8x128xf32>
    %cst_75 = arith.constant dense<0.000000e+00> : vector<8x128xf32>
    %126 = tpu.matmul %122, %85, %cst_75 {dimension_numbers = #tpu.dot_dimension_numbers<[1], [0], [0], [1], [0, 0, 1, 1], [], []>} : vector<8x128xf32>, vector<128x128xf32>, vector<8x128xf32> -> vector<8x128xf32>
    %127 = arith.addf %125, %126 : vector<8x128xf32>
    %128 = math.tanh %127 : vector<8x128xf32>
    %c7_i32_76 = arith.constant 7 : i32
    %129 = arith.index_cast %c7_i32_76 : i32 to index
    %c0_77 = arith.constant 0 : index
    %c0_78 = arith.constant 0 : index
    %130 = vector.load %arg11[%129, %c0_77, %c0_78] : memref<8x8x128xf32, #tpu.memory_space<vmem>>, vector<1x8x128xf32>
    %131 = vector.shape_cast %130 : vector<1x8x128xf32> to vector<8x128xf32>
    %cst_79 = arith.constant dense<0.000000e+00> : vector<8x128xf32>
    %132 = tpu.matmul %128, %85, %cst_79 {dimension_numbers = #tpu.dot_dimension_numbers<[1], [0], [0], [1], [0, 0, 1, 1], [], []>} : vector<8x128xf32>, vector<128x128xf32>, vector<8x128xf32> -> vector<8x128xf32>
    %133 = arith.addf %131, %132 : vector<8x128xf32>
    %134 = math.tanh %133 : vector<8x128xf32>
    %c8_i32_80 = arith.constant 8 : i32
    %c0_81 = arith.constant 0 : index
    %c0_82 = arith.constant 0 : index
    %135 = vector.load %arg10[%c0_81, %c0_82] : memref<8x128xf32, #tpu.memory_space<vmem>>, vector<8x128xf32>
    tpu.vector_store %arg10[%c0_81, %c0_82], %134 {strides = array<i32>} : memref<8x128xf32, #tpu.memory_space<vmem>>, vector<8x128xf32>,
    %c0_i32_83 = arith.constant 0 : i32
    %136 = arith.cmpi eq, %arg1, %c0_i32_83 : i32
    %137 = arith.extui %136 : i1 to i32
    %c0_i32_84 = arith.constant 0 : i32
    %138 = arith.cmpi ne, %137, %c0_i32_84 : i32
    scf.if %138 {
      %c0_85 = arith.constant 0 : index
      %c0_86 = arith.constant 0 : index
      %139 = vector.load %arg7[%c0_85, %c0_86] : memref<128x128xf32, #tpu.memory_space<vmem>>, vector<128x128xf32>
      %cst_87 = arith.constant dense<0.000000e+00> : vector<8x128xf32>
      %140 = tpu.matmul %134, %139, %cst_87 {dimension_numbers = #tpu.dot_dimension_numbers<[1], [0], [0], [1], [0, 0, 1, 1], [], []>} : vector<8x128xf32>, vector<128x128xf32>, vector<8x128xf32> -> vector<8x128xf32>
      %c0_88 = arith.constant 0 : index
      %c0_89 = arith.constant 0 : index
      %141 = vector.load %arg8[%c0_88, %c0_89] : memref<1x128xf32, #tpu.memory_space<vmem>>, vector<1x128xf32>
      %142 = vector.broadcast %141 : vector<1x128xf32> to vector<8x128xf32>
      %143 = arith.addf %140, %142 : vector<8x128xf32>
      %144 = arith.negf %143 : vector<8x128xf32>
      %145 = math.exp %144 : vector<8x128xf32>
      %cst_90 = arith.constant 1.000000e+00 : f32
      %146 = vector.broadcast %cst_90 : f32 to vector<8x128xf32>
      %147 = arith.addf %146, %145 : vector<8x128xf32>
      %148 = arith.divf %146, %147 : vector<8x128xf32>
      %c0_91 = arith.constant 0 : index
      %c0_92 = arith.constant 0 : index
      %149 = vector.load %arg9[%c0_91, %c0_92] : memref<8x128xf32, #tpu.memory_space<vmem>>, vector<8x128xf32>
      tpu.vector_store %arg9[%c0_91, %c0_92], %148 {strides = array<i32>} : memref<8x128xf32, #tpu.memory_space<vmem>>, vector<8x128xf32>,
    } else {
    }
    return
  }
  func.func @transform_0(%arg0: i32, %arg1: i32) -> (i32, i32, i32) {
    %c0_i32 = arith.constant 0 : i32
    %c0_i32_0 = arith.constant 0 : i32
    return %arg1, %arg0, %c0_i32 : i32, i32, i32
  }
  func.func @transform_1(%arg0: i32, %arg1: i32) -> (i32, i32) {
    %c0_i32 = arith.constant 0 : i32
    %c0_i32_0 = arith.constant 0 : i32
    return %arg0, %c0_i32 : i32, i32
  }
  func.func @transform_2(%arg0: i32, %arg1: i32) -> (i32, i32) {
    %c0_i32 = arith.constant 0 : i32
    %c0_i32_0 = arith.constant 0 : i32
    %c0_i32_1 = arith.constant 0 : i32
    return %c0_i32, %c0_i32_0 : i32, i32
  }
  func.func @transform_3(%arg0: i32, %arg1: i32) -> (i32, i32) {
    %c0_i32 = arith.constant 0 : i32
    %c0_i32_0 = arith.constant 0 : i32
    %c0_i32_1 = arith.constant 0 : i32
    return %c0_i32, %c0_i32_0 : i32, i32
  }
  func.func @transform_4(%arg0: i32, %arg1: i32) -> (i32, i32) {
    %c0_i32 = arith.constant 0 : i32
    %c0_i32_0 = arith.constant 0 : i32
    %c0_i32_1 = arith.constant 0 : i32
    return %c0_i32, %c0_i32_0 : i32, i32
  }
  func.func @transform_5(%arg0: i32, %arg1: i32) -> (i32, i32) {
    %c0_i32 = arith.constant 0 : i32
    %c0_i32_0 = arith.constant 0 : i32
    %c0_i32_1 = arith.constant 0 : i32
    return %c0_i32, %c0_i32_0 : i32, i32
  }
  func.func @transform_6(%arg0: i32, %arg1: i32) -> (i32, i32) {
    %c0_i32 = arith.constant 0 : i32
    %c0_i32_0 = arith.constant 0 : i32
    %c0_i32_1 = arith.constant 0 : i32
    return %c0_i32, %c0_i32_0 : i32, i32
  }
  func.func @transform_7(%arg0: i32, %arg1: i32) -> (i32, i32) {
    %c0_i32 = arith.constant 0 : i32
    %c0_i32_0 = arith.constant 0 : i32
    return %arg0, %c0_i32 : i32, i32
  }
}

</mosaic_0001>

<llo_original>
// kernel: tpu_custom_call.1
$region0: #{tpu_custom_call.1}
  #allocation0 [shape = 'u32[]', space=smem, size = 0x4, offset = 0x4, fixed_abs, tag = 'smem constant byte address 0x4 - core index']
  #allocation1 [shape = 'u32[144,128]{1,0:T(1,128)}', space=vmem, size = 0x12000, scoped, tag = 'internal scratch']
  #allocation2 [shape = 'f32[8,128]{1,0:T(8,128)}', space=vmem, size = 0x1000, scoped, tag = 'scratch operand']
  #allocation3 [shape = 'f32[8,8,128]{2,1,0:T(8,128)}', space=vmem, size = 0x8000, scoped, tag = 'scratch operand']
  %s0 = inlined_call_operand.vmem [shape: f32[8,8,4], index: 0, kind: input, shape index: {}]
  %s1 = inlined_call_operand.vmem [shape: f32[8,128], index: 1, kind: input, shape index: {}]
  %s2 = inlined_call_operand.vmem [shape: f32[4,128], index: 2, kind: input, shape index: {}]
  %s3 = inlined_call_operand.vmem [shape: f32[1,128], index: 3, kind: input, shape index: {}]
  %s4 = inlined_call_operand.hbm [shape: f32[128,128], index: 4, kind: input, shape index: {}]
  %s5 = inlined_call_operand.hbm [shape: f32[128,128], index: 5, kind: input, shape index: {}]
  %s6 = inlined_call_operand.vmem [shape: f32[1,128], index: 6, kind: input, shape index: {}]
  %s7 = inlined_call_operand.hbm [shape: f32[8,128], index: 7, kind: output, shape index: {}]
  %s8 = sld [smem:[#allocation0]]
  $region54: #{tpu_custom_call.1} parent=0
    _
  %s10 = ssub.s32 1, %s8
  %s11 = scalar_select 0, %s10, %s8
  $region1: #{tpu_custom_call.1} parent=0
    #allocation4 [shape = 'u8[65536]{0}', space=vmem, size = 0x10000, scoped, tag = 'input window, operand 4, single buffered']
    #allocation5 [shape = 's32[1]{0}', space=sflag, size = 0x4, scoped, tag = 'scoped memory for tpu_custom_call.1']
    #allocation6 [shape = 's32[1]{0}', space=sflag, size = 0x4, scoped, tag = 'scoped memory for tpu_custom_call.1']
    #allocation7 [shape = 'u8[65536]{0}', space=vmem, size = 0x10000, scoped, tag = 'input window, operand 5, single buffered']
    #allocation8 [shape = 's32[1]{0}', space=sflag, size = 0x4, scoped, tag = 'scoped memory for tpu_custom_call.1']
    #allocation9 [shape = 'u8[4096]{0}', space=vmem, size = 0x1000, scoped, tag = 'output window, operand 0, single buffered']
    %12 = vsyncpa [#allocation5], 0
    %13 = vsyncpa [#allocation8], 0
    %14 = vsyncpa [#allocation6], 0
    // Predicated region
    $region2: #{tpu_custom_call.1} parent=1 // pred_check
      _
    $region3: #{tpu_custom_call.1} parent=1 // pred_check_branch
      %16 = sbr.rel (0) target = $region5
    $region4: #{tpu_custom_call.1} parent=1 // pred_region
      _
    $region5: #{tpu_custom_call.1} parent=1 // pred_fallthru
      _
    // Predicated region
    $region6: #{tpu_custom_call.1} parent=1 // pred_check
      _
    $region7: #{tpu_custom_call.1} parent=1 // pred_check_branch
      %18 = sbr.rel (0) target = $region9
    $region8: #{tpu_custom_call.1} parent=1 // pred_region
      _
    $region9: #{tpu_custom_call.1} parent=1 // pred_fallthru
      _
    // Predicated region
    $region10: #{tpu_custom_call.1} parent=1 // pred_check
      _
    $region11: #{tpu_custom_call.1} parent=1 // pred_check_branch
      %20 = sbr.rel (0) target = $region13
    $region12: #{tpu_custom_call.1} parent=1 // pred_region
      _
    $region13: #{tpu_custom_call.1} parent=1 // pred_fallthru
      _
    // Predicated region
    $region14: #{tpu_custom_call.1} parent=1 // pred_check
      _
    $region15: #{tpu_custom_call.1} parent=1 // pred_check_branch
      %22 = sbr.rel (0) target = $region17
    $region16: #{tpu_custom_call.1} parent=1 // pred_region
      _
    $region17: #{tpu_custom_call.1} parent=1 // pred_fallthru
      _
    // Predicated region
    $region18: #{tpu_custom_call.1} parent=1 // pred_check
      _
    $region19: #{tpu_custom_call.1} parent=1 // pred_check_branch
      %24 = sbr.rel (0) target = $region21
    $region20: #{tpu_custom_call.1} parent=1 // pred_region
      %s26 = ssub.s32 2048, 2048
      %27 = vsyncadd [#allocation5], %s26
      %s28 = sshll.u32 [#allocation4], 4
      %s29 = int_to_ptr.vmem [resolvable:$true] %s28
      %34 = dma.hbm_to_vmem [thread:$0]  %s4, 2048, %s29, [#allocation5], 128, 128, 8
    $region21: #{tpu_custom_call.1} parent=1 // pred_fallthru
      _
    // Predicated region
    $region22: #{tpu_custom_call.1} parent=1 // pred_check
      _
    $region23: #{tpu_custom_call.1} parent=1 // pred_check_branch
      %36 = sbr.rel (0) target = $region25
    $region24: #{tpu_custom_call.1} parent=1 // pred_region
      %s38 = ssub.s32 2048, 2048
      %39 = vsyncadd [#allocation8], %s38
      %s40 = sshll.u32 [#allocation7], 4
      %s41 = int_to_ptr.vmem [resolvable:$true] %s40
      %46 = dma.hbm_to_vmem [thread:$0]  %s5, 2048, %s41, [#allocation8], 128, 128, 8
    $region25: #{tpu_custom_call.1} parent=1 // pred_fallthru
      _
    // Predicated region
    $region26: #{tpu_custom_call.1} parent=1 // pred_check
      _
    $region27: #{tpu_custom_call.1} parent=1 // pred_check_branch
      %48 = sbr.rel (0) target = $region29
    $region28: #{tpu_custom_call.1} parent=1 // pred_region
      _
    $region29: #{tpu_custom_call.1} parent=1 // pred_fallthru
      _
    // Predicated region
    $region30: #{tpu_custom_call.1} parent=1 // pred_check
      _
    $region31: #{tpu_custom_call.1} parent=1 // pred_check_branch
      %50 = sbr.rel (0) target = $region33
    $region32: #{tpu_custom_call.1} parent=1 // pred_region
      %51 = dma.done [#allocation5], 2048
    $region33: #{tpu_custom_call.1} parent=1 // pred_fallthru
      _
    // Predicated region
    $region34: #{tpu_custom_call.1} parent=1 // pred_check
      _
    $region35: #{tpu_custom_call.1} parent=1 // pred_check_branch
      %53 = sbr.rel (0) target = $region37
    $region36: #{tpu_custom_call.1} parent=1 // pred_region
      %54 = dma.done [#allocation8], 2048
    $region37: #{tpu_custom_call.1} parent=1 // pred_fallthru
      _
    %p55 = scmp.eq.s32.totalorder 0, 0
    // Predicated region
    $region38: #{tpu_custom_call.1} parent=1 // pred_check
      %p56 = pneg %p55
    $region39: #{tpu_custom_call.1} parent=1 // pred_check_branch
      %58 = sbr.rel (%p56) target = $region41
    $region40: #{tpu_custom_call.1} parent=1 // pred_region
      %v59 = vld [vmem:[%s1] sm:$0xff]
      %60 = vst [vmem:[#allocation2] sm:$0xff] %v59
    $region41: #{tpu_custom_call.1} parent=1 // pred_fallthru
      _
    %v61 = vld [vmem:[%s2] sm:$0xf]
    %v62 = vld [vmem:[%s3] sm:$0x1]
    %v63 = vld [vmem:[%s0] sm:$0xff]
    %v65 = vlaneseq
    %v66 = vshrl.u32 %v65, 7
    %v67 = vsub.s32 0, %v66
    %v68 = vrot.slane %v62, %v67
    %vm70 = vcmask 31744
    %v72 = vsel %vm70, %v63, 0
    %vm74 = vcmask 1043456
    %v76 = vsel %vm74, %v61, 0
    %78 = vmatprep.subr.mxu0 0.0
    %79 = vmatpush1.msra.mxu0 %v76
    %80 = vmatprep.subr.mxu0 0.0
    %81 = vmatpush1.msra.mxu0 0.0
    %82 = vmatprep.subr.mxu0 0.0
    %83 = vmatpush1.msra.mxu0 0.0
    %84 = vmatprep.subr.mxu0 0.0
    %85 = vmatpush1.msra.mxu0 0.0
    %86 = vmatprep.subr.mxu0 0.0
    %87 = vmatpush1.msra.mxu0 0.0
    %88 = vmatprep.subr.mxu0 0.0
    %89 = vmatpush1.msra.mxu0 0.0
    %90 = vmatprep.subr.mxu0 0.0
    %91 = vmatpush1.msra.mxu0 0.0
    %92 = vmatprep.subr.mxu0 0.0
    %93 = vmatpush1.msra.mxu0 0.0
    %94 = vmatprep.subr.mxu0 0.0
    %95 = vmatpush1.msra.mxu0 0.0
    %96 = vmatprep.subr.mxu0 0.0
    %97 = vmatpush1.msra.mxu0 0.0
    %98 = vmatprep.subr.mxu0 0.0
    %99 = vmatpush1.msra.mxu0 0.0
    %100 = vmatprep.subr.mxu0 0.0
    %101 = vmatpush1.msra.mxu0 0.0
    %102 = vmatprep.subr.mxu0 0.0
    %103 = vmatpush1.msra.mxu0 0.0
    %104 = vmatprep.subr.mxu0 0.0
    %105 = vmatpush1.msra.mxu0 0.0
    %106 = vmatprep.subr.mxu0 0.0
    %107 = vmatpush1.msra.mxu0 0.0
    %108 = vmatprep.subr.mxu0 0.0
    %109 = vmatpush1.msra.mxu0 0.0
    %110 = vmatprep.subr.mxu0 0.0
    %111 = vmatpush1.msra.mxu0 0.0
    %112 = vmatprep.subr.mxu0 0.0
    %113 = vmatpush1.msra.mxu0 0.0
    %114 = vmatprep.subr.mxu0 0.0
    %115 = vmatpush1.msra.mxu0 0.0
    %116 = vmatprep.subr.mxu0 0.0
    %117 = vmatpush1.msra.mxu0 0.0
    %118 = vmatprep.subr.mxu0 0.0
    %119 = vmatpush1.msra.mxu0 0.0
    %120 = vmatprep.subr.mxu0 0.0
    %121 = vmatpush1.msra.mxu0 0.0
    %122 = vmatprep.subr.mxu0 0.0
    %123 = vmatpush1.msra.mxu0 0.0
    %124 = vmatprep.subr.mxu0 0.0
    %125 = vmatpush1.msra.mxu0 0.0
    %126 = vmatprep.subr.mxu0 0.0
    %127 = vmatpush1.msra.mxu0 0.0
    %128 = vmatprep.subr.mxu0 0.0
    %129 = vmatpush1.msra.mxu0 0.0
    %130 = vmatprep.subr.mxu0 0.0
    %131 = vmatpush1.msra.mxu0 0.0
    %132 = vmatprep.subr.mxu0 0.0
    %133 = vmatpush1.msra.mxu0 0.0
    %134 = vmatprep.subr.mxu0 0.0
    %135 = vmatpush1.msra.mxu0 0.0
    %136 = vmatprep.subr.mxu0 0.0
    %137 = vmatpush1.msra.mxu0 0.0
    %138 = vmatprep.subr.mxu0 0.0
    %139 = vmatpush1.msra.mxu0 0.0
    %140 = vmatprep.subr.mxu0 0.0
    %141 = vmatpush1.msra.mxu0 0.0
    %142 = vmatprep.mubr.f32.mxu0 0.0
    %143 = vmatmul.mubr.f32.gmra.mrb[0].mxu0 %v72
    %v144 = vpop.f32.mrb[0].mxu0
    %v145 = vadd.f32 %v68, %v144
    %v146 = vpop.f32.mrb[0].mxu0
    %147 = vdwg.mxu0
    %148 = vst [vmem:[#allocation3] sm:$0xff] %v145
    %s149 = scalar_lea.vmem %s0, 8
    %v150 = vld [vmem:[%s149] sm:$0xff]
    %v152 = vsel %vm70, %v150, 0
    %154 = vmatprep.subr.mxu0 0.0
    %155 = vmatpush1.msra.mxu0 %v76
    %156 = vmatprep.subr.mxu0 0.0
    %157 = vmatpush1.msra.mxu0 0.0
    %158 = vmatprep.subr.mxu0 0.0
    %159 = vmatpush1.msra.mxu0 0.0
    %160 = vmatprep.subr.mxu0 0.0
    %161 = vmatpush1.msra.mxu0 0.0
    %162 = vmatprep.subr.mxu0 0.0
    %163 = vmatpush1.msra.mxu0 0.0
    %164 = vmatprep.subr.mxu0 0.0
    %165 = vmatpush1.msra.mxu0 0.0
    %166 = vmatprep.subr.mxu0 0.0
    %167 = vmatpush1.msra.mxu0 0.0
    %168 = vmatprep.subr.mxu0 0.0
    %169 = vmatpush1.msra.mxu0 0.0
    %170 = vmatprep.subr.mxu0 0.0
    %171 = vmatpush1.msra.mxu0 0.0
    %172 = vmatprep.subr.mxu0 0.0
    %173 = vmatpush1.msra.mxu0 0.0
    %174 = vmatprep.subr.mxu0 0.0
    %175 = vmatpush1.msra.mxu0 0.0
    %176 = vmatprep.subr.mxu0 0.0
    %177 = vmatpush1.msra.mxu0 0.0
    %178 = vmatprep.subr.mxu0 0.0
    %179 = vmatpush1.msra.mxu0 0.0
    %180 = vmatprep.subr.mxu0 0.0
    %181 = vmatpush1.msra.mxu0 0.0
    %182 = vmatprep.subr.mxu0 0.0
    %183 = vmatpush1.msra.mxu0 0.0
    %184 = vmatprep.subr.mxu0 0.0
    %185 = vmatpush1.msra.mxu0 0.0
    %186 = vmatprep.subr.mxu0 0.0
    %187 = vmatpush1.msra.mxu0 0.0
    %188 = vmatprep.subr.mxu0 0.0
    %189 = vmatpush1.msra.mxu0 0.0
    %190 = vmatprep.subr.mxu0 0.0
    %191 = vmatpush1.msra.mxu0 0.0
    %192 = vmatprep.subr.mxu0 0.0
    %193 = vmatpush1.msra.mxu0 0.0
    %194 = vmatprep.subr.mxu0 0.0
    %195 = vmatpush1.msra.mxu0 0.0
    %196 = vmatprep.subr.mxu0 0.0
    %197 = vmatpush1.msra.mxu0 0.0
    %198 = vmatprep.subr.mxu0 0.0
    %199 = vmatpush1.msra.mxu0 0.0
    %200 = vmatprep.subr.mxu0 0.0
    %201 = vmatpush1.msra.mxu0 0.0
    %202 = vmatprep.subr.mxu0 0.0
    %203 = vmatpush1.msra.mxu0 0.0
    %204 = vmatprep.subr.mxu0 0.0
    %205 = vmatpush1.msra.mxu0 0.0
    %206 = vmatprep.subr.mxu0 0.0
    %207 = vmatpush1.msra.mxu0 0.0
    %208 = vmatprep.subr.mxu0 0.0
    %209 = vmatpush1.msra.mxu0 0.0
    %210 = vmatprep.subr.mxu0 0.0
    %211 = vmatpush1.msra.mxu0 0.0
    %212 = vmatprep.subr.mxu0 0.0
    %213 = vmatpush1.msra.mxu0 0.0
    %214 = vmatprep.subr.mxu0 0.0
    %215 = vmatpush1.msra.mxu0 0.0
    %216 = vmatprep.subr.mxu0 0.0
    %217 = vmatpush1.msra.mxu0 0.0
    %218 = vmatprep.mubr.f32.mxu0 0.0
    %219 = vmatmul.mubr.f32.gmra.mrb[0].mxu0 %v152
    %v220 = vpop.f32.mrb[0].mxu0
    %v221 = vadd.f32 %v68, %v220
    %v222 = vpop.f32.mrb[0].mxu0
    %223 = vdwg.mxu0
    %s224 = scalar_lea.vmem [#allocation3], 8
    %225 = vst [vmem:[%s224] sm:$0xff] %v221
    %s226 = scalar_lea.vmem %s0, 16
    %v227 = vld [vmem:[%s226] sm:$0xff]
    %v229 = vsel %vm70, %v227, 0
    %231 = vmatprep.subr.mxu0 0.0
    %232 = vmatpush1.msra.mxu0 %v76
    %233 = vmatprep.subr.mxu0 0.0
    %234 = vmatpush1.msra.mxu0 0.0
    %235 = vmatprep.subr.mxu0 0.0
    %236 = vmatpush1.msra.mxu0 0.0
    %237 = vmatprep.subr.mxu0 0.0
    %238 = vmatpush1.msra.mxu0 0.0
    %239 = vmatprep.subr.mxu0 0.0
    %240 = vmatpush1.msra.mxu0 0.0
    %241 = vmatprep.subr.mxu0 0.0
    %242 = vmatpush1.msra.mxu0 0.0
    %243 = vmatprep.subr.mxu0 0.0
    %244 = vmatpush1.msra.mxu0 0.0
    %245 = vmatprep.subr.mxu0 0.0
    %246 = vmatpush1.msra.mxu0 0.0
    %247 = vmatprep.subr.mxu0 0.0
    %248 = vmatpush1.msra.mxu0 0.0
    %249 = vmatprep.subr.mxu0 0.0
    %250 = vmatpush1.msra.mxu0 0.0
    %251 = vmatprep.subr.mxu0 0.0
    %252 = vmatpush1.msra.mxu0 0.0
    %253 = vmatprep.subr.mxu0 0.0
    %254 = vmatpush1.msra.mxu0 0.0
    %255 = vmatprep.subr.mxu0 0.0
    %256 = vmatpush1.msra.mxu0 0.0
    %257 = vmatprep.subr.mxu0 0.0
    %258 = vmatpush1.msra.mxu0 0.0
    %259 = vmatprep.subr.mxu0 0.0
    %260 = vmatpush1.msra.mxu0 0.0
    %261 = vmatprep.subr.mxu0 0.0
    %262 = vmatpush1.msra.mxu0 0.0
    %263 = vmatprep.subr.mxu0 0.0
    %264 = vmatpush1.msra.mxu0 0.0
    %265 = vmatprep.subr.mxu0 0.0
    %266 = vmatpush1.msra.mxu0 0.0
    %267 = vmatprep.subr.mxu0 0.0
    %268 = vmatpush1.msra.mxu0 0.0
    %269 = vmatprep.subr.mxu0 0.0
    %270 = vmatpush1.msra.mxu0 0.0
    %271 = vmatprep.subr.mxu0 0.0
    %272 = vmatpush1.msra.mxu0 0.0
    %273 = vmatprep.subr.mxu0 0.0
    %274 = vmatpush1.msra.mxu0 0.0
    %275 = vmatprep.subr.mxu0 0.0
    %276 = vmatpush1.msra.mxu0 0.0
    %277 = vmatprep.subr.mxu0 0.0
    %278 = vmatpush1.msra.mxu0 0.0
    %279 = vmatprep.subr.mxu0 0.0
    %280 = vmatpush1.msra.mxu0 0.0
    %281 = vmatprep.subr.mxu0 0.0
    %282 = vmatpush1.msra.mxu0 0.0
    %283 = vmatprep.subr.mxu0 0.0
    %284 = vmatpush1.msra.mxu0 0.0
    %285 = vmatprep.subr.mxu0 0.0
    %286 = vmatpush1.msra.mxu0 0.0
    %287 = vmatprep.subr.mxu0 0.0
    %288 = vmatpush1.msra.mxu0 0.0
    %289 = vmatprep.subr.mxu0 0.0
    %290 = vmatpush1.msra.mxu0 0.0
    %291 = vmatprep.subr.mxu0 0.0
    %292 = vmatpush1.msra.mxu0 0.0
    %293 = vmatprep.subr.mxu0 0.0
    %294 = vmatpush1.msra.mxu0 0.0
    %295 = vmatprep.mubr.f32.mxu0 0.0
    %296 = vmatmul.mubr.f32.gmra.mrb[0].mxu0 %v229
    %v297 = vpop.f32.mrb[0].mxu0
    %v298 = vadd.f32 %v68, %v297
    %v299 = vpop.f32.mrb[0].mxu0
    %300 = vdwg.mxu0
    %s301 = scalar_lea.vmem [#allocation3], 16
    %302 = vst [vmem:[%s301] sm:$0xff] %v298
    %s303 = scalar_lea.vmem %s0, 24
    %v304 = vld [vmem:[%s303] sm:$0xff]
    %v306 = vsel %vm70, %v304, 0
    %308 = vmatprep.subr.mxu0 0.0
    %309 = vmatpush1.msra.mxu0 %v76
    %310 = vmatprep.subr.mxu0 0.0
    %311 = vmatpush1.msra.mxu0 0.0
    %312 = vmatprep.subr.mxu0 0.0
    %313 = vmatpush1.msra.mxu0 0.0
    %314 = vmatprep.subr.mxu0 0.0
    %315 = vmatpush1.msra.mxu0 0.0
    %316 = vmatprep.subr.mxu0 0.0
    %317 = vmatpush1.msra.mxu0 0.0
    %318 = vmatprep.subr.mxu0 0.0
    %319 = vmatpush1.msra.mxu0 0.0
    %320 = vmatprep.subr.mxu0 0.0
    %321 = vmatpush1.msra.mxu0 0.0
    %322 = vmatprep.subr.mxu0 0.0
    %323 = vmatpush1.msra.mxu0 0.0
    %324 = vmatprep.subr.mxu0 0.0
    %325 = vmatpush1.msra.mxu0 0.0
    %326 = vmatprep.subr.mxu0 0.0
    %327 = vmatpush1.msra.mxu0 0.0
    %328 = vmatprep.subr.mxu0 0.0
    %329 = vmatpush1.msra.mxu0 0.0
    %330 = vmatprep.subr.mxu0 0.0
    %331 = vmatpush1.msra.mxu0 0.0
    %332 = vmatprep.subr.mxu0 0.0
    %333 = vmatpush1.msra.mxu0 0.0
    %334 = vmatprep.subr.mxu0 0.0
    %335 = vmatpush1.msra.mxu0 0.0
    %336 = vmatprep.subr.mxu0 0.0
    %337 = vmatpush1.msra.mxu0 0.0
    %338 = vmatprep.subr.mxu0 0.0
    %339 = vmatpush1.msra.mxu0 0.0
    %340 = vmatprep.subr.mxu0 0.0
    %341 = vmatpush1.msra.mxu0 0.0
    %342 = vmatprep.subr.mxu0 0.0
    %343 = vmatpush1.msra.mxu0 0.0
    %344 = vmatprep.subr.mxu0 0.0
    %345 = vmatpush1.msra.mxu0 0.0
    %346 = vmatprep.subr.mxu0 0.0
    %347 = vmatpush1.msra.mxu0 0.0
    %348 = vmatprep.subr.mxu0 0.0
    %349 = vmatpush1.msra.mxu0 0.0
    %350 = vmatprep.subr.mxu0 0.0
    %351 = vmatpush1.msra.mxu0 0.0
    %352 = vmatprep.subr.mxu0 0.0
    %353 = vmatpush1.msra.mxu0 0.0
    %354 = vmatprep.subr.mxu0 0.0
    %355 = vmatpush1.msra.mxu0 0.0
    %356 = vmatprep.subr.mxu0 0.0
    %357 = vmatpush1.msra.mxu0 0.0
    %358 = vmatprep.subr.mxu0 0.0
    %359 = vmatpush1.msra.mxu0 0.0
    %360 = vmatprep.subr.mxu0 0.0
    %361 = vmatpush1.msra.mxu0 0.0
    %362 = vmatprep.subr.mxu0 0.0
    %363 = vmatpush1.msra.mxu0 0.0
    %364 = vmatprep.subr.mxu0 0.0
    %365 = vmatpush1.msra.mxu0 0.0
    %366 = vmatprep.subr.mxu0 0.0
    %367 = vmatpush1.msra.mxu0 0.0
    %368 = vmatprep.subr.mxu0 0.0
    %369 = vmatpush1.msra.mxu0 0.0
    %370 = vmatprep.subr.mxu0 0.0
    %371 = vmatpush1.msra.mxu0 0.0
    %372 = vmatprep.mubr.f32.mxu0 0.0
    %373 = vmatmul.mubr.f32.gmra.mrb[0].mxu0 %v306
    %v374 = vpop.f32.mrb[0].mxu0
    %v375 = vadd.f32 %v68, %v374
    %v376 = vpop.f32.mrb[0].mxu0
    %377 = vdwg.mxu0
    %s378 = scalar_lea.vmem [#allocation3], 24
    %379 = vst [vmem:[%s378] sm:$0xff] %v375
    %s380 = scalar_lea.vmem %s0, 32
    %v381 = vld [vmem:[%s380] sm:$0xff]
    %v383 = vsel %vm70, %v381, 0
    %385 = vmatprep.subr.mxu0 0.0
    %386 = vmatpush1.msra.mxu0 %v76
    %387 = vmatprep.subr.mxu0 0.0
    %388 = vmatpush1.msra.mxu0 0.0
    %389 = vmatprep.subr.mxu0 0.0
    %390 = vmatpush1.msra.mxu0 0.0
    %391 = vmatprep.subr.mxu0 0.0
    %392 = vmatpush1.msra.mxu0 0.0
    %393 = vmatprep.subr.mxu0 0.0
    %394 = vmatpush1.msra.mxu0 0.0
    %395 = vmatprep.subr.mxu0 0.0
    %396 = vmatpush1.msra.mxu0 0.0
    %397 = vmatprep.subr.mxu0 0.0
    %398 = vmatpush1.msra.mxu0 0.0
    %399 = vmatprep.subr.mxu0 0.0
    %400 = vmatpush1.msra.mxu0 0.0
    %401 = vmatprep.subr.mxu0 0.0
    %402 = vmatpush1.msra.mxu0 0.0
    %403 = vmatprep.subr.mxu0 0.0
    %404 = vmatpush1.msra.mxu0 0.0
    %405 = vmatprep.subr.mxu0 0.0
    %406 = vmatpush1.msra.mxu0 0.0
    %407 = vmatprep.subr.mxu0 0.0
    %408 = vmatpush1.msra.mxu0 0.0
    %409 = vmatprep.subr.mxu0 0.0
    %410 = vmatpush1.msra.mxu0 0.0
    %411 = vmatprep.subr.mxu0 0.0
    %412 = vmatpush1.msra.mxu0 0.0
    %413 = vmatprep.subr.mxu0 0.0
    %414 = vmatpush1.msra.mxu0 0.0
    %415 = vmatprep.subr.mxu0 0.0
    %416 = vmatpush1.msra.mxu0 0.0
    %417 = vmatprep.subr.mxu0 0.0
    %418 = vmatpush1.msra.mxu0 0.0
    %419 = vmatprep.subr.mxu0 0.0
    %420 = vmatpush1.msra.mxu0 0.0
    %421 = vmatprep.subr.mxu0 0.0
    %422 = vmatpush1.msra.mxu0 0.0
    %423 = vmatprep.subr.mxu0 0.0
    %424 = vmatpush1.msra.mxu0 0.0
    %425 = vmatprep.subr.mxu0 0.0
    %426 = vmatpush1.msra.mxu0 0.0
    %427 = vmatprep.subr.mxu0 0.0
    %428 = vmatpush1.msra.mxu0 0.0
    %429 = vmatprep.subr.mxu0 0.0
    %430 = vmatpush1.msra.mxu0 0.0
    %431 = vmatprep.subr.mxu0 0.0
    %432 = vmatpush1.msra.mxu0 0.0
    %433 = vmatprep.subr.mxu0 0.0
    %434 = vmatpush1.msra.mxu0 0.0
    %435 = vmatprep.subr.mxu0 0.0
    %436 = vmatpush1.msra.mxu0 0.0
    %437 = vmatprep.subr.mxu0 0.0
    %438 = vmatpush1.msra.mxu0 0.0
    %439 = vmatprep.subr.mxu0 0.0
    %440 = vmatpush1.msra.mxu0 0.0
    %441 = vmatprep.subr.mxu0 0.0
    %442 = vmatpush1.msra.mxu0 0.0
    %443 = vmatprep.subr.mxu0 0.0
    %444 = vmatpush1.msra.mxu0 0.0
    %445 = vmatprep.subr.mxu0 0.0
    %446 = vmatpush1.msra.mxu0 0.0
    %447 = vmatprep.subr.mxu0 0.0
    %448 = vmatpush1.msra.mxu0 0.0
    %449 = vmatprep.mubr.f32.mxu0 0.0
    %450 = vmatmul.mubr.f32.gmra.mrb[0].mxu0 %v383
    %v451 = vpop.f32.mrb[0].mxu0
    %v452 = vadd.f32 %v68, %v451
    %v453 = vpop.f32.mrb[0].mxu0
    %454 = vdwg.mxu0
    %s455 = scalar_lea.vmem [#allocation3], 32
    %456 = vst [vmem:[%s455] sm:$0xff] %v452
    %s457 = scalar_lea.vmem %s0, 40
    %v458 = vld [vmem:[%s457] sm:$0xff]
    %v460 = vsel %vm70, %v458, 0
    %462 = vmatprep.subr.mxu0 0.0
    %463 = vmatpush1.msra.mxu0 %v76
    %464 = vmatprep.subr.mxu0 0.0
    %465 = vmatpush1.msra.mxu0 0.0
    %466 = vmatprep.subr.mxu0 0.0
    %467 = vmatpush1.msra.mxu0 0.0
    %468 = vmatprep.subr.mxu0 0.0
    %469 = vmatpush1.msra.mxu0 0.0
    %470 = vmatprep.subr.mxu0 0.0
    %471 = vmatpush1.msra.mxu0 0.0
    %472 = vmatprep.subr.mxu0 0.0
    %473 = vmatpush1.msra.mxu0 0.0
    %474 = vmatprep.subr.mxu0 0.0
    %475 = vmatpush1.msra.mxu0 0.0
    %476 = vmatprep.subr.mxu0 0.0
    %477 = vmatpush1.msra.mxu0 0.0
    %478 = vmatprep.subr.mxu0 0.0
    %479 = vmatpush1.msra.mxu0 0.0
    %480 = vmatprep.subr.mxu0 0.0
    %481 = vmatpush1.msra.mxu0 0.0
    %482 = vmatprep.subr.mxu0 0.0
    %483 = vmatpush1.msra.mxu0 0.0
    %484 = vmatprep.subr.mxu0 0.0
    %485 = vmatpush1.msra.mxu0 0.0
    %486 = vmatprep.subr.mxu0 0.0
    %487 = vmatpush1.msra.mxu0 0.0
    %488 = vmatprep.subr.mxu0 0.0
    %489 = vmatpush1.msra.mxu0 0.0
    %490 = vmatprep.subr.mxu0 0.0
    %491 = vmatpush1.msra.mxu0 0.0
    %492 = vmatprep.subr.mxu0 0.0
    %493 = vmatpush1.msra.mxu0 0.0
    %494 = vmatprep.subr.mxu0 0.0
    %495 = vmatpush1.msra.mxu0 0.0
    %496 = vmatprep.subr.mxu0 0.0
    %497 = vmatpush1.msra.mxu0 0.0
    %498 = vmatprep.subr.mxu0 0.0
    %499 = vmatpush1.msra.mxu0 0.0
    %500 = vmatprep.subr.mxu0 0.0
    %501 = vmatpush1.msra.mxu0 0.0
    %502 = vmatprep.subr.mxu0 0.0
    %503 = vmatpush1.msra.mxu0 0.0
    %504 = vmatprep.subr.mxu0 0.0
    %505 = vmatpush1.msra.mxu0 0.0
    %506 = vmatprep.subr.mxu0 0.0
    %507 = vmatpush1.msra.mxu0 0.0
    %508 = vmatprep.subr.mxu0 0.0
    %509 = vmatpush1.msra.mxu0 0.0
    %510 = vmatprep.subr.mxu0 0.0
    %511 = vmatpush1.msra.mxu0 0.0
    %512 = vmatprep.subr.mxu0 0.0
    %513 = vmatpush1.msra.mxu0 0.0
    %514 = vmatprep.subr.mxu0 0.0
    %515 = vmatpush1.msra.mxu0 0.0
    %516 = vmatprep.subr.mxu0 0.0
    %517 = vmatpush1.msra.mxu0 0.0
    %518 = vmatprep.subr.mxu0 0.0
    %519 = vmatpush1.msra.mxu0 0.0
    %520 = vmatprep.subr.mxu0 0.0
    %521 = vmatpush1.msra.mxu0 0.0
    %522 = vmatprep.subr.mxu0 0.0
    %523 = vmatpush1.msra.mxu0 0.0
    %524 = vmatprep.subr.mxu0 0.0
    %525 = vmatpush1.msra.mxu0 0.0
    %526 = vmatprep.mubr.f32.mxu0 0.0
    %527 = vmatmul.mubr.f32.gmra.mrb[0].mxu0 %v460
    %v528 = vpop.f32.mrb[0].mxu0
    %v529 = vadd.f32 %v68, %v528
    %v530 = vpop.f32.mrb[0].mxu0
    %531 = vdwg.mxu0
    %s532 = scalar_lea.vmem [#allocation3], 40
    %533 = vst [vmem:[%s532] sm:$0xff] %v529
    %s534 = scalar_lea.vmem %s0, 48
    %v535 = vld [vmem:[%s534] sm:$0xff]
    %v537 = vsel %vm70, %v535, 0
    %539 = vmatprep.subr.mxu0 0.0
    %540 = vmatpush1.msra.mxu0 %v76
    %541 = vmatprep.subr.mxu0 0.0
    %542 = vmatpush1.msra.mxu0 0.0
    %543 = vmatprep.subr.mxu0 0.0
    %544 = vmatpush1.msra.mxu0 0.0
    %545 = vmatprep.subr.mxu0 0.0
    %546 = vmatpush1.msra.mxu0 0.0
    %547 = vmatprep.subr.mxu0 0.0
    %548 = vmatpush1.msra.mxu0 0.0
    %549 = vmatprep.subr.mxu0 0.0
    %550 = vmatpush1.msra.mxu0 0.0
    %551 = vmatprep.subr.mxu0 0.0
    %552 = vmatpush1.msra.mxu0 0.0
    %553 = vmatprep.subr.mxu0 0.0
    %554 = vmatpush1.msra.mxu0 0.0
    %555 = vmatprep.subr.mxu0 0.0
    %556 = vmatpush1.msra.mxu0 0.0
    %557 = vmatprep.subr.mxu0 0.0
    %558 = vmatpush1.msra.mxu0 0.0
    %559 = vmatprep.subr.mxu0 0.0
    %560 = vmatpush1.msra.mxu0 0.0
    %561 = vmatprep.subr.mxu0 0.0
    %562 = vmatpush1.msra.mxu0 0.0
    %563 = vmatprep.subr.mxu0 0.0
    %564 = vmatpush1.msra.mxu0 0.0
    %565 = vmatprep.subr.mxu0 0.0
    %566 = vmatpush1.msra.mxu0 0.0
    %567 = vmatprep.subr.mxu0 0.0
    %568 = vmatpush1.msra.mxu0 0.0
    %569 = vmatprep.subr.mxu0 0.0
    %570 = vmatpush1.msra.mxu0 0.0
    %571 = vmatprep.subr.mxu0 0.0
    %572 = vmatpush1.msra.mxu0 0.0
    %573 = vmatprep.subr.mxu0 0.0
    %574 = vmatpush1.msra.mxu0 0.0
    %575 = vmatprep.subr.mxu0 0.0
    %576 = vmatpush1.msra.mxu0 0.0
    %577 = vmatprep.subr.mxu0 0.0
    %578 = vmatpush1.msra.mxu0 0.0
    %579 = vmatprep.subr.mxu0 0.0
    %580 = vmatpush1.msra.mxu0 0.0
    %581 = vmatprep.subr.mxu0 0.0
    %582 = vmatpush1.msra.mxu0 0.0
    %583 = vmatprep.subr.mxu0 0.0
    %584 = vmatpush1.msra.mxu0 0.0
    %585 = vmatprep.subr.mxu0 0.0
    %586 = vmatpush1.msra.mxu0 0.0
    %587 = vmatprep.subr.mxu0 0.0
    %588 = vmatpush1.msra.mxu0 0.0
    %589 = vmatprep.subr.mxu0 0.0
    %590 = vmatpush1.msra.mxu0 0.0
    %591 = vmatprep.subr.mxu0 0.0
    %592 = vmatpush1.msra.mxu0 0.0
    %593 = vmatprep.subr.mxu0 0.0
    %594 = vmatpush1.msra.mxu0 0.0
    %595 = vmatprep.subr.mxu0 0.0
    %596 = vmatpush1.msra.mxu0 0.0
    %597 = vmatprep.subr.mxu0 0.0
    %598 = vmatpush1.msra.mxu0 0.0
    %599 = vmatprep.subr.mxu0 0.0
    %600 = vmatpush1.msra.mxu0 0.0
    %601 = vmatprep.subr.mxu0 0.0
    %602 = vmatpush1.msra.mxu0 0.0
    %603 = vmatprep.mubr.f32.mxu0 0.0
    %604 = vmatmul.mubr.f32.gmra.mrb[0].mxu0 %v537
    %v605 = vpop.f32.mrb[0].mxu0
    %v606 = vadd.f32 %v68, %v605
    %v607 = vpop.f32.mrb[0].mxu0
    %608 = vdwg.mxu0
    %s609 = scalar_lea.vmem [#allocation3], 48
    %610 = vst [vmem:[%s609] sm:$0xff] %v606
    %s611 = scalar_lea.vmem %s0, 56
    %v612 = vld [vmem:[%s611] sm:$0xff]
    %v614 = vsel %vm70, %v612, 0
    %616 = vmatprep.subr.mxu0 0.0
    %617 = vmatpush1.msra.mxu0 %v76
    %618 = vmatprep.subr.mxu0 0.0
    %619 = vmatpush1.msra.mxu0 0.0
    %620 = vmatprep.subr.mxu0 0.0
    %621 = vmatpush1.msra.mxu0 0.0
    %622 = vmatprep.subr.mxu0 0.0
    %623 = vmatpush1.msra.mxu0 0.0
    %624 = vmatprep.subr.mxu0 0.0
    %625 = vmatpush1.msra.mxu0 0.0
    %626 = vmatprep.subr.mxu0 0.0
    %627 = vmatpush1.msra.mxu0 0.0
    %628 = vmatprep.subr.mxu0 0.0
    %629 = vmatpush1.msra.mxu0 0.0
    %630 = vmatprep.subr.mxu0 0.0
    %631 = vmatpush1.msra.mxu0 0.0
    %632 = vmatprep.subr.mxu0 0.0
    %633 = vmatpush1.msra.mxu0 0.0
    %634 = vmatprep.subr.mxu0 0.0
    %635 = vmatpush1.msra.mxu0 0.0
    %636 = vmatprep.subr.mxu0 0.0
    %637 = vmatpush1.msra.mxu0 0.0
    %638 = vmatprep.subr.mxu0 0.0
    %639 = vmatpush1.msra.mxu0 0.0
    %640 = vmatprep.subr.mxu0 0.0
    %641 = vmatpush1.msra.mxu0 0.0
    %642 = vmatprep.subr.mxu0 0.0
    %643 = vmatpush1.msra.mxu0 0.0
    %644 = vmatprep.subr.mxu0 0.0
    %645 = vmatpush1.msra.mxu0 0.0
    %646 = vmatprep.subr.mxu0 0.0
    %647 = vmatpush1.msra.mxu0 0.0
    %648 = vmatprep.subr.mxu0 0.0
    %649 = vmatpush1.msra.mxu0 0.0
    %650 = vmatprep.subr.mxu0 0.0
    %651 = vmatpush1.msra.mxu0 0.0
    %652 = vmatprep.subr.mxu0 0.0
    %653 = vmatpush1.msra.mxu0 0.0
    %654 = vmatprep.subr.mxu0 0.0
    %655 = vmatpush1.msra.mxu0 0.0
    %656 = vmatprep.subr.mxu0 0.0
    %657 = vmatpush1.msra.mxu0 0.0
    %658 = vmatprep.subr.mxu0 0.0
    %659 = vmatpush1.msra.mxu0 0.0
    %660 = vmatprep.subr.mxu0 0.0
    %661 = vmatpush1.msra.mxu0 0.0
    %662 = vmatprep.subr.mxu0 0.0
    %663 = vmatpush1.msra.mxu0 0.0
    %664 = vmatprep.subr.mxu0 0.0
    %665 = vmatpush1.msra.mxu0 0.0
    %666 = vmatprep.subr.mxu0 0.0
    %667 = vmatpush1.msra.mxu0 0.0
    %668 = vmatprep.subr.mxu0 0.0
    %669 = vmatpush1.msra.mxu0 0.0
    %670 = vmatprep.subr.mxu0 0.0
    %671 = vmatpush1.msra.mxu0 0.0
    %672 = vmatprep.subr.mxu0 0.0
    %673 = vmatpush1.msra.mxu0 0.0
    %674 = vmatprep.subr.mxu0 0.0
    %675 = vmatpush1.msra.mxu0 0.0
    %676 = vmatprep.subr.mxu0 0.0
    %677 = vmatpush1.msra.mxu0 0.0
    %678 = vmatprep.subr.mxu0 0.0
    %679 = vmatpush1.msra.mxu0 0.0
    %680 = vmatprep.mubr.f32.mxu0 0.0
    %681 = vmatmul.mubr.f32.gmra.mrb[0].mxu0 %v614
    %v682 = vpop.f32.mrb[0].mxu0
    %v683 = vadd.f32 %v68, %v682
    %v684 = vpop.f32.mrb[0].mxu0
    %685 = vdwg.mxu0
    %s686 = scalar_lea.vmem [#allocation3], 56
    %687 = vst [vmem:[%s686] sm:$0xff] %v683
    %v688 = vld [vmem:[#allocation4] sm:$0xff]
    %v689 = vld [vmem:[#allocation4 + $0x8] sm:$0xff]
    %v690 = vld [vmem:[#allocation4 + $0x10] sm:$0xff]
    %v691 = vld [vmem:[#allocation4 + $0x18] sm:$0xff]
    %v692 = vld [vmem:[#allocation4 + $0x20] sm:$0xff]
    %v693 = vld [vmem:[#allocation4 + $0x28] sm:$0xff]
    %v694 = vld [vmem:[#allocation4 + $0x30] sm:$0xff]
    %v695 = vld [vmem:[#allocation4 + $0x38] sm:$0xff]
    %v696 = vld [vmem:[#allocation4 + $0x40] sm:$0xff]
    %v697 = vld [vmem:[#allocation4 + $0x48] sm:$0xff]
    %v698 = vld [vmem:[#allocation4 + $0x50] sm:$0xff]
    %v699 = vld [vmem:[#allocation4 + $0x58] sm:$0xff]
    %v700 = vld [vmem:[#allocation4 + $0x60] sm:$0xff]
    %v701 = vld [vmem:[#allocation4 + $0x68] sm:$0xff]
    %v702 = vld [vmem:[#allocation4 + $0x70] sm:$0xff]
    %v703 = vld [vmem:[#allocation4 + $0x78] sm:$0xff]
    %v704 = vld [vmem:[#allocation2] sm:$0xff]
    %v705 = vld [vmem:[#allocation3] sm:$0xff]
    %706 = vmatprep.subr.mxu0 0.0
    %707 = vmatpush1.msra.mxu0 %v688
    %708 = vmatprep.subr.mxu0 0.0
    %709 = vmatpush1.msra.mxu0 %v689
    %710 = vmatprep.subr.mxu0 0.0
    %711 = vmatpush1.msra.mxu0 %v690
    %712 = vmatprep.subr.mxu0 0.0
    %713 = vmatpush1.msra.mxu0 %v691
    %714 = vmatprep.subr.mxu0 0.0
    %715 = vmatpush1.msra.mxu0 %v692
    %716 = vmatprep.subr.mxu0 0.0
    %717 = vmatpush1.msra.mxu0 %v693
    %718 = vmatprep.subr.mxu0 0.0
    %719 = vmatpush1.msra.mxu0 %v694
    %720 = vmatprep.subr.mxu0 0.0
    %721 = vmatpush1.msra.mxu0 %v695
    %722 = vmatprep.subr.mxu0 0.0
    %723 = vmatpush1.msra.mxu0 %v696
    %724 = vmatprep.subr.mxu0 0.0
    %725 = vmatpush1.msra.mxu0 %v697
    %726 = vmatprep.subr.mxu0 0.0
    %727 = vmatpush1.msra.mxu0 %v698
    %728 = vmatprep.subr.mxu0 0.0
    %729 = vmatpush1.msra.mxu0 %v699
    %730 = vmatprep.subr.mxu0 0.0
    %731 = vmatpush1.msra.mxu0 %v700
    %732 = vmatprep.subr.mxu0 0.0
    %733 = vmatpush1.msra.mxu0 %v701
    %734 = vmatprep.subr.mxu0 0.0
    %735 = vmatpush1.msra.mxu0 %v702
    %736 = vmatprep.subr.mxu0 0.0
    %737 = vmatpush1.msra.mxu0 %v703
    %738 = vmatprep.subr.mxu0 0.0
    %739 = vmatpush1.msra.mxu0 0.0
    %740 = vmatprep.subr.mxu0 0.0
    %741 = vmatpush1.msra.mxu0 0.0
    %742 = vmatprep.subr.mxu0 0.0
    %743 = vmatpush1.msra.mxu0 0.0
    %744 = vmatprep.subr.mxu0 0.0
    %745 = vmatpush1.msra.mxu0 0.0
    %746 = vmatprep.subr.mxu0 0.0
    %747 = vmatpush1.msra.mxu0 0.0
    %748 = vmatprep.subr.mxu0 0.0
    %749 = vmatpush1.msra.mxu0 0.0
    %750 = vmatprep.subr.mxu0 0.0
    %751 = vmatpush1.msra.mxu0 0.0
    %752 = vmatprep.subr.mxu0 0.0
    %753 = vmatpush1.msra.mxu0 0.0
    %754 = vmatprep.subr.mxu0 0.0
    %755 = vmatpush1.msra.mxu0 0.0
    %756 = vmatprep.subr.mxu0 0.0
    %757 = vmatpush1.msra.mxu0 0.0
    %758 = vmatprep.subr.mxu0 0.0
    %759 = vmatpush1.msra.mxu0 0.0
    %760 = vmatprep.subr.mxu0 0.0
    %761 = vmatpush1.msra.mxu0 0.0
    %762 = vmatprep.subr.mxu0 0.0
    %763 = vmatpush1.msra.mxu0 0.0
    %764 = vmatprep.subr.mxu0 0.0
    %765 = vmatpush1.msra.mxu0 0.0
    %766 = vmatprep.subr.mxu0 0.0
    %767 = vmatpush1.msra.mxu0 0.0
    %768 = vmatprep.subr.mxu0 0.0
    %769 = vmatpush1.msra.mxu0 0.0
    %770 = vmatprep.mubr.f32.mxu0 0.0
    %771 = vmatmul.mubr.f32.gmra.mrb[0].mxu0 %v704
    %v772 = vpop.f32.mrb[0].mxu0
    %v773 = vadd.f32 0.0, %v772
    %v774 = vpop.f32.mrb[0].mxu0
    %775 = vdwg.mxu0
    %v776 = vadd.f32 %v705, %v773
    %v777 = vtanh.pop %v776
    %v778 = vld [vmem:[%s224] sm:$0xff]
    %779 = vmatprep.subr.mxu0 0.0
    %780 = vmatpush1.msra.mxu0 %v688
    %781 = vmatprep.subr.mxu0 0.0
    %782 = vmatpush1.msra.mxu0 %v689
    %783 = vmatprep.subr.mxu0 0.0
    %784 = vmatpush1.msra.mxu0 %v690
    %785 = vmatprep.subr.mxu0 0.0
    %786 = vmatpush1.msra.mxu0 %v691
    %787 = vmatprep.subr.mxu0 0.0
    %788 = vmatpush1.msra.mxu0 %v692
    %789 = vmatprep.subr.mxu0 0.0
    %790 = vmatpush1.msra.mxu0 %v693
    %791 = vmatprep.subr.mxu0 0.0
    %792 = vmatpush1.msra.mxu0 %v694
    %793 = vmatprep.subr.mxu0 0.0
    %794 = vmatpush1.msra.mxu0 %v695
    %795 = vmatprep.subr.mxu0 0.0
    %796 = vmatpush1.msra.mxu0 %v696
    %797 = vmatprep.subr.mxu0 0.0
    %798 = vmatpush1.msra.mxu0 %v697
    %799 = vmatprep.subr.mxu0 0.0
    %800 = vmatpush1.msra.mxu0 %v698
    %801 = vmatprep.subr.mxu0 0.0
    %802 = vmatpush1.msra.mxu0 %v699
    %803 = vmatprep.subr.mxu0 0.0
    %804 = vmatpush1.msra.mxu0 %v700
    %805 = vmatprep.subr.mxu0 0.0
    %806 = vmatpush1.msra.mxu0 %v701
    %807 = vmatprep.subr.mxu0 0.0
    %808 = vmatpush1.msra.mxu0 %v702
    %809 = vmatprep.subr.mxu0 0.0
    %810 = vmatpush1.msra.mxu0 %v703
    %811 = vmatprep.subr.mxu0 0.0
    %812 = vmatpush1.msra.mxu0 0.0
    %813 = vmatprep.subr.mxu0 0.0
    %814 = vmatpush1.msra.mxu0 0.0
    %815 = vmatprep.subr.mxu0 0.0
    %816 = vmatpush1.msra.mxu0 0.0
    %817 = vmatprep.subr.mxu0 0.0
    %818 = vmatpush1.msra.mxu0 0.0
    %819 = vmatprep.subr.mxu0 0.0
    %820 = vmatpush1.msra.mxu0 0.0
    %821 = vmatprep.subr.mxu0 0.0
    %822 = vmatpush1.msra.mxu0 0.0
    %823 = vmatprep.subr.mxu0 0.0
    %824 = vmatpush1.msra.mxu0 0.0
    %825 = vmatprep.subr.mxu0 0.0
    %826 = vmatpush1.msra.mxu0 0.0
    %827 = vmatprep.subr.mxu0 0.0
    %828 = vmatpush1.msra.mxu0 0.0
    %829 = vmatprep.subr.mxu0 0.0
    %830 = vmatpush1.msra.mxu0 0.0
    %831 = vmatprep.subr.mxu0 0.0
    %832 = vmatpush1.msra.mxu0 0.0
    %833 = vmatprep.subr.mxu0 0.0
    %834 = vmatpush1.msra.mxu0 0.0
    %835 = vmatprep.subr.mxu0 0.0
    %836 = vmatpush1.msra.mxu0 0.0
    %837 = vmatprep.subr.mxu0 0.0
    %838 = vmatpush1.msra.mxu0 0.0
    %839 = vmatprep.subr.mxu0 0.0
    %840 = vmatpush1.msra.mxu0 0.0
    %841 = vmatprep.subr.mxu0 0.0
    %842 = vmatpush1.msra.mxu0 0.0
    %843 = vmatprep.mubr.f32.mxu0 0.0
    %844 = vmatmul.mubr.f32.gmra.mrb[0].mxu0 %v777
    %v845 = vpop.f32.mrb[0].mxu0
    %v846 = vadd.f32 0.0, %v845
    %v847 = vpop.f32.mrb[0].mxu0
    %848 = vdwg.mxu0
    %v849 = vadd.f32 %v778, %v846
    %v850 = vtanh.pop %v849
    %v851 = vld [vmem:[%s301] sm:$0xff]
    %852 = vmatprep.subr.mxu0 0.0
    %853 = vmatpush1.msra.mxu0 %v688
    %854 = vmatprep.subr.mxu0 0.0
    %855 = vmatpush1.msra.mxu0 %v689
    %856 = vmatprep.subr.mxu0 0.0
    %857 = vmatpush1.msra.mxu0 %v690
    %858 = vmatprep.subr.mxu0 0.0
    %859 = vmatpush1.msra.mxu0 %v691
    %860 = vmatprep.subr.mxu0 0.0
    %861 = vmatpush1.msra.mxu0 %v692
    %862 = vmatprep.subr.mxu0 0.0
    %863 = vmatpush1.msra.mxu0 %v693
    %864 = vmatprep.subr.mxu0 0.0
    %865 = vmatpush1.msra.mxu0 %v694
    %866 = vmatprep.subr.mxu0 0.0
    %867 = vmatpush1.msra.mxu0 %v695
    %868 = vmatprep.subr.mxu0 0.0
    %869 = vmatpush1.msra.mxu0 %v696
    %870 = vmatprep.subr.mxu0 0.0
    %871 = vmatpush1.msra.mxu0 %v697
    %872 = vmatprep.subr.mxu0 0.0
    %873 = vmatpush1.msra.mxu0 %v698
    %874 = vmatprep.subr.mxu0 0.0
    %875 = vmatpush1.msra.mxu0 %v699
    %876 = vmatprep.subr.mxu0 0.0
    %877 = vmatpush1.msra.mxu0 %v700
    %878 = vmatprep.subr.mxu0 0.0
    %879 = vmatpush1.msra.mxu0 %v701
    %880 = vmatprep.subr.mxu0 0.0
    %881 = vmatpush1.msra.mxu0 %v702
    %882 = vmatprep.subr.mxu0 0.0
    %883 = vmatpush1.msra.mxu0 %v703
    %884 = vmatprep.subr.mxu0 0.0
    %885 = vmatpush1.msra.mxu0 0.0
    %886 = vmatprep.subr.mxu0 0.0
    %887 = vmatpush1.msra.mxu0 0.0
    %888 = vmatprep.subr.mxu0 0.0
    %889 = vmatpush1.msra.mxu0 0.0
    %890 = vmatprep.subr.mxu0 0.0
    %891 = vmatpush1.msra.mxu0 0.0
    %892 = vmatprep.subr.mxu0 0.0
    %893 = vmatpush1.msra.mxu0 0.0
    %894 = vmatprep.subr.mxu0 0.0
    %895 = vmatpush1.msra.mxu0 0.0
    %896 = vmatprep.subr.mxu0 0.0
    %897 = vmatpush1.msra.mxu0 0.0
    %898 = vmatprep.subr.mxu0 0.0
    %899 = vmatpush1.msra.mxu0 0.0
    %900 = vmatprep.subr.mxu0 0.0
    %901 = vmatpush1.msra.mxu0 0.0
    %902 = vmatprep.subr.mxu0 0.0
    %903 = vmatpush1.msra.mxu0 0.0
    %904 = vmatprep.subr.mxu0 0.0
    %905 = vmatpush1.msra.mxu0 0.0
    %906 = vmatprep.subr.mxu0 0.0
    %907 = vmatpush1.msra.mxu0 0.0
    %908 = vmatprep.subr.mxu0 0.0
    %909 = vmatpush1.msra.mxu0 0.0
    %910 = vmatprep.subr.mxu0 0.0
    %911 = vmatpush1.msra.mxu0 0.0
    %912 = vmatprep.subr.mxu0 0.0
    %913 = vmatpush1.msra.mxu0 0.0
    %914 = vmatprep.subr.mxu0 0.0
    %915 = vmatpush1.msra.mxu0 0.0
    %916 = vmatprep.mubr.f32.mxu0 0.0
    %917 = vmatmul.mubr.f32.gmra.mrb[0].mxu0 %v850
    %v918 = vpop.f32.mrb[0].mxu0
    %v919 = vadd.f32 0.0, %v918
    %v920 = vpop.f32.mrb[0].mxu0
    %921 = vdwg.mxu0
    %v922 = vadd.f32 %v851, %v919
    %v923 = vtanh.pop %v922
    %v924 = vld [vmem:[%s378] sm:$0xff]
    %925 = vmatprep.subr.mxu0 0.0
    %926 = vmatpush1.msra.mxu0 %v688
    %927 = vmatprep.subr.mxu0 0.0
    %928 = vmatpush1.msra.mxu0 %v689
    %929 = vmatprep.subr.mxu0 0.0
    %930 = vmatpush1.msra.mxu0 %v690
    %931 = vmatprep.subr.mxu0 0.0
    %932 = vmatpush1.msra.mxu0 %v691
    %933 = vmatprep.subr.mxu0 0.0
    %934 = vmatpush1.msra.mxu0 %v692
    %935 = vmatprep.subr.mxu0 0.0
    %936 = vmatpush1.msra.mxu0 %v693
    %937 = vmatprep.subr.mxu0 0.0
    %938 = vmatpush1.msra.mxu0 %v694
    %939 = vmatprep.subr.mxu0 0.0
    %940 = vmatpush1.msra.mxu0 %v695
    %941 = vmatprep.subr.mxu0 0.0
    %942 = vmatpush1.msra.mxu0 %v696
    %943 = vmatprep.subr.mxu0 0.0
    %944 = vmatpush1.msra.mxu0 %v697
    %945 = vmatprep.subr.mxu0 0.0
    %946 = vmatpush1.msra.mxu0 %v698
    %947 = vmatprep.subr.mxu0 0.0
    %948 = vmatpush1.msra.mxu0 %v699
    %949 = vmatprep.subr.mxu0 0.0
    %950 = vmatpush1.msra.mxu0 %v700
    %951 = vmatprep.subr.mxu0 0.0
    %952 = vmatpush1.msra.mxu0 %v701
    %953 = vmatprep.subr.mxu0 0.0
    %954 = vmatpush1.msra.mxu0 %v702
    %955 = vmatprep.subr.mxu0 0.0
    %956 = vmatpush1.msra.mxu0 %v703
    %957 = vmatprep.subr.mxu0 0.0
    %958 = vmatpush1.msra.mxu0 0.0
    %959 = vmatprep.subr.mxu0 0.0
    %960 = vmatpush1.msra.mxu0 0.0
    %961 = vmatprep.subr.mxu0 0.0
    %962 = vmatpush1.msra.mxu0 0.0
    %963 = vmatprep.subr.mxu0 0.0
    %964 = vmatpush1.msra.mxu0 0.0
    %965 = vmatprep.subr.mxu0 0.0
    %966 = vmatpush1.msra.mxu0 0.0
    %967 = vmatprep.subr.mxu0 0.0
    %968 = vmatpush1.msra.mxu0 0.0
    %969 = vmatprep.subr.mxu0 0.0
    %970 = vmatpush1.msra.mxu0 0.0
    %971 = vmatprep.subr.mxu0 0.0
    %972 = vmatpush1.msra.mxu0 0.0
    %973 = vmatprep.subr.mxu0 0.0
    %974 = vmatpush1.msra.mxu0 0.0
    %975 = vmatprep.subr.mxu0 0.0
    %976 = vmatpush1.msra.mxu0 0.0
    %977 = vmatprep.subr.mxu0 0.0
    %978 = vmatpush1.msra.mxu0 0.0
    %979 = vmatprep.subr.mxu0 0.0
    %980 = vmatpush1.msra.mxu0 0.0
    %981 = vmatprep.subr.mxu0 0.0
    %982 = vmatpush1.msra.mxu0 0.0
    %983 = vmatprep.subr.mxu0 0.0
    %984 = vmatpush1.msra.mxu0 0.0
    %985 = vmatprep.subr.mxu0 0.0
    %986 = vmatpush1.msra.mxu0 0.0
    %987 = vmatprep.subr.mxu0 0.0
    %988 = vmatpush1.msra.mxu0 0.0
    %989 = vmatprep.mubr.f32.mxu0 0.0
    %990 = vmatmul.mubr.f32.gmra.mrb[0].mxu0 %v923
    %v991 = vpop.f32.mrb[0].mxu0
    %v992 = vadd.f32 0.0, %v991
    %v993 = vpop.f32.mrb[0].mxu0
    %994 = vdwg.mxu0
    %v995 = vadd.f32 %v924, %v992
    %v996 = vtanh.pop %v995
    %v997 = vld [vmem:[%s455] sm:$0xff]
    %998 = vmatprep.subr.mxu0 0.0
    %999 = vmatpush1.msra.mxu0 %v688
    %1000 = vmatprep.subr.mxu0 0.0
    %1001 = vmatpush1.msra.mxu0 %v689
    %1002 = vmatprep.subr.mxu0 0.0
    %1003 = vmatpush1.msra.mxu0 %v690
    %1004 = vmatprep.subr.mxu0 0.0
    %1005 = vmatpush1.msra.mxu0 %v691
    %1006 = vmatprep.subr.mxu0 0.0
    %1007 = vmatpush1.msra.mxu0 %v692
    %1008 = vmatprep.subr.mxu0 0.0
    %1009 = vmatpush1.msra.mxu0 %v693
    %1010 = vmatprep.subr.mxu0 0.0
    %1011 = vmatpush1.msra.mxu0 %v694
    %1012 = vmatprep.subr.mxu0 0.0
    %1013 = vmatpush1.msra.mxu0 %v695
    %1014 = vmatprep.subr.mxu0 0.0
    %1015 = vmatpush1.msra.mxu0 %v696
    %1016 = vmatprep.subr.mxu0 0.0
    %1017 = vmatpush1.msra.mxu0 %v697
    %1018 = vmatprep.subr.mxu0 0.0
    %1019 = vmatpush1.msra.mxu0 %v698
    %1020 = vmatprep.subr.mxu0 0.0
    %1021 = vmatpush1.msra.mxu0 %v699
    %1022 = vmatprep.subr.mxu0 0.0
    %1023 = vmatpush1.msra.mxu0 %v700
    %1024 = vmatprep.subr.mxu0 0.0
    %1025 = vmatpush1.msra.mxu0 %v701
    %1026 = vmatprep.subr.mxu0 0.0
    %1027 = vmatpush1.msra.mxu0 %v702
    %1028 = vmatprep.subr.mxu0 0.0
    %1029 = vmatpush1.msra.mxu0 %v703
    %1030 = vmatprep.subr.mxu0 0.0
    %1031 = vmatpush1.msra.mxu0 0.0
    %1032 = vmatprep.subr.mxu0 0.0
    %1033 = vmatpush1.msra.mxu0 0.0
    %1034 = vmatprep.subr.mxu0 0.0
    %1035 = vmatpush1.msra.mxu0 0.0
    %1036 = vmatprep.subr.mxu0 0.0
    %1037 = vmatpush1.msra.mxu0 0.0
    %1038 = vmatprep.subr.mxu0 0.0
    %1039 = vmatpush1.msra.mxu0 0.0
    %1040 = vmatprep.subr.mxu0 0.0
    %1041 = vmatpush1.msra.mxu0 0.0
    %1042 = vmatprep.subr.mxu0 0.0
    %1043 = vmatpush1.msra.mxu0 0.0
    %1044 = vmatprep.subr.mxu0 0.0
    %1045 = vmatpush1.msra.mxu0 0.0
    %1046 = vmatprep.subr.mxu0 0.0
    %1047 = vmatpush1.msra.mxu0 0.0
    %1048 = vmatprep.subr.mxu0 0.0
    %1049 = vmatpush1.msra.mxu0 0.0
    %1050 = vmatprep.subr.mxu0 0.0
    %1051 = vmatpush1.msra.mxu0 0.0
    %1052 = vmatprep.subr.mxu0 0.0
    %1053 = vmatpush1.msra.mxu0 0.0
    %1054 = vmatprep.subr.mxu0 0.0
    %1055 = vmatpush1.msra.mxu0 0.0
    %1056 = vmatprep.subr.mxu0 0.0
    %1057 = vmatpush1.msra.mxu0 0.0
    %1058 = vmatprep.subr.mxu0 0.0
    %1059 = vmatpush1.msra.mxu0 0.0
    %1060 = vmatprep.subr.mxu0 0.0
    %1061 = vmatpush1.msra.mxu0 0.0
    %1062 = vmatprep.mubr.f32.mxu0 0.0
    %1063 = vmatmul.mubr.f32.gmra.mrb[0].mxu0 %v996
    %v1064 = vpop.f32.mrb[0].mxu0
    %v1065 = vadd.f32 0.0, %v1064
    %v1066 = vpop.f32.mrb[0].mxu0
    %1067 = vdwg.mxu0
    %v1068 = vadd.f32 %v997, %v1065
    %v1069 = vtanh.pop %v1068
    %v1070 = vld [vmem:[%s532] sm:$0xff]
    %1071 = vmatprep.subr.mxu0 0.0
    %1072 = vmatpush1.msra.mxu0 %v688
    %1073 = vmatprep.subr.mxu0 0.0
    %1074 = vmatpush1.msra.mxu0 %v689
    %1075 = vmatprep.subr.mxu0 0.0
    %1076 = vmatpush1.msra.mxu0 %v690
    %1077 = vmatprep.subr.mxu0 0.0
    %1078 = vmatpush1.msra.mxu0 %v691
    %1079 = vmatprep.subr.mxu0 0.0
    %1080 = vmatpush1.msra.mxu0 %v692
    %1081 = vmatprep.subr.mxu0 0.0
    %1082 = vmatpush1.msra.mxu0 %v693
    %1083 = vmatprep.subr.mxu0 0.0
    %1084 = vmatpush1.msra.mxu0 %v694
    %1085 = vmatprep.subr.mxu0 0.0
    %1086 = vmatpush1.msra.mxu0 %v695
    %1087 = vmatprep.subr.mxu0 0.0
    %1088 = vmatpush1.msra.mxu0 %v696
    %1089 = vmatprep.subr.mxu0 0.0
    %1090 = vmatpush1.msra.mxu0 %v697
    %1091 = vmatprep.subr.mxu0 0.0
    %1092 = vmatpush1.msra.mxu0 %v698
    %1093 = vmatprep.subr.mxu0 0.0
    %1094 = vmatpush1.msra.mxu0 %v699
    %1095 = vmatprep.subr.mxu0 0.0
    %1096 = vmatpush1.msra.mxu0 %v700
    %1097 = vmatprep.subr.mxu0 0.0
    %1098 = vmatpush1.msra.mxu0 %v701
    %1099 = vmatprep.subr.mxu0 0.0
    %1100 = vmatpush1.msra.mxu0 %v702
    %1101 = vmatprep.subr.mxu0 0.0
    %1102 = vmatpush1.msra.mxu0 %v703
    %1103 = vmatprep.subr.mxu0 0.0
    %1104 = vmatpush1.msra.mxu0 0.0
    %1105 = vmatprep.subr.mxu0 0.0
    %1106 = vmatpush1.msra.mxu0 0.0
    %1107 = vmatprep.subr.mxu0 0.0
    %1108 = vmatpush1.msra.mxu0 0.0
    %1109 = vmatprep.subr.mxu0 0.0
    %1110 = vmatpush1.msra.mxu0 0.0
    %1111 = vmatprep.subr.mxu0 0.0
    %1112 = vmatpush1.msra.mxu0 0.0
    %1113 = vmatprep.subr.mxu0 0.0
    %1114 = vmatpush1.msra.mxu0 0.0
    %1115 = vmatprep.subr.mxu0 0.0
    %1116 = vmatpush1.msra.mxu0 0.0
    %1117 = vmatprep.subr.mxu0 0.0
    %1118 = vmatpush1.msra.mxu0 0.0
    %1119 = vmatprep.subr.mxu0 0.0
    %1120 = vmatpush1.msra.mxu0 0.0
    %1121 = vmatprep.subr.mxu0 0.0
    %1122 = vmatpush1.msra.mxu0 0.0
    %1123 = vmatprep.subr.mxu0 0.0
    %1124 = vmatpush1.msra.mxu0 0.0
    %1125 = vmatprep.subr.mxu0 0.0
    %1126 = vmatpush1.msra.mxu0 0.0
    %1127 = vmatprep.subr.mxu0 0.0
    %1128 = vmatpush1.msra.mxu0 0.0
    %1129 = vmatprep.subr.mxu0 0.0
    %1130 = vmatpush1.msra.mxu0 0.0
    %1131 = vmatprep.subr.mxu0 0.0
    %1132 = vmatpush1.msra.mxu0 0.0
    %1133 = vmatprep.subr.mxu0 0.0
    %1134 = vmatpush1.msra.mxu0 0.0
    %1135 = vmatprep.mubr.f32.mxu0 0.0
    %1136 = vmatmul.mubr.f32.gmra.mrb[0].mxu0 %v1069
    %v1137 = vpop.f32.mrb[0].mxu0
    %v1138 = vadd.f32 0.0, %v1137
    %v1139 = vpop.f32.mrb[0].mxu0
    %1140 = vdwg.mxu0
    %v1141 = vadd.f32 %v1070, %v1138
    %v1142 = vtanh.pop %v1141
    %v1143 = vld [vmem:[%s609] sm:$0xff]
    %1144 = vmatprep.subr.mxu0 0.0
    %1145 = vmatpush1.msra.mxu0 %v688
    %1146 = vmatprep.subr.mxu0 0.0
    %1147 = vmatpush1.msra.mxu0 %v689
    %1148 = vmatprep.subr.mxu0 0.0
    %1149 = vmatpush1.msra.mxu0 %v690
    %1150 = vmatprep.subr.mxu0 0.0
    %1151 = vmatpush1.msra.mxu0 %v691
    %1152 = vmatprep.subr.mxu0 0.0
    %1153 = vmatpush1.msra.mxu0 %v692
    %1154 = vmatprep.subr.mxu0 0.0
    %1155 = vmatpush1.msra.mxu0 %v693
    %1156 = vmatprep.subr.mxu0 0.0
    %1157 = vmatpush1.msra.mxu0 %v694
    %1158 = vmatprep.subr.mxu0 0.0
    %1159 = vmatpush1.msra.mxu0 %v695
    %1160 = vmatprep.subr.mxu0 0.0
    %1161 = vmatpush1.msra.mxu0 %v696
    %1162 = vmatprep.subr.mxu0 0.0
    %1163 = vmatpush1.msra.mxu0 %v697
    %1164 = vmatprep.subr.mxu0 0.0
    %1165 = vmatpush1.msra.mxu0 %v698
    %1166 = vmatprep.subr.mxu0 0.0
    %1167 = vmatpush1.msra.mxu0 %v699
    %1168 = vmatprep.subr.mxu0 0.0
    %1169 = vmatpush1.msra.mxu0 %v700
    %1170 = vmatprep.subr.mxu0 0.0
    %1171 = vmatpush1.msra.mxu0 %v701
    %1172 = vmatprep.subr.mxu0 0.0
    %1173 = vmatpush1.msra.mxu0 %v702
    %1174 = vmatprep.subr.mxu0 0.0
    %1175 = vmatpush1.msra.mxu0 %v703
    %1176 = vmatprep.subr.mxu0 0.0
    %1177 = vmatpush1.msra.mxu0 0.0
    %1178 = vmatprep.subr.mxu0 0.0
    %1179 = vmatpush1.msra.mxu0 0.0
    %1180 = vmatprep.subr.mxu0 0.0
    %1181 = vmatpush1.msra.mxu0 0.0
    %1182 = vmatprep.subr.mxu0 0.0
    %1183 = vmatpush1.msra.mxu0 0.0
    %1184 = vmatprep.subr.mxu0 0.0
    %1185 = vmatpush1.msra.mxu0 0.0
    %1186 = vmatprep.subr.mxu0 0.0
    %1187 = vmatpush1.msra.mxu0 0.0
    %1188 = vmatprep.subr.mxu0 0.0
    %1189 = vmatpush1.msra.mxu0 0.0
    %1190 = vmatprep.subr.mxu0 0.0
    %1191 = vmatpush1.msra.mxu0 0.0
    %1192 = vmatprep.subr.mxu0 0.0
    %1193 = vmatpush1.msra.mxu0 0.0
    %1194 = vmatprep.subr.mxu0 0.0
    %1195 = vmatpush1.msra.mxu0 0.0
    %1196 = vmatprep.subr.mxu0 0.0
    %1197 = vmatpush1.msra.mxu0 0.0
    %1198 = vmatprep.subr.mxu0 0.0
    %1199 = vmatpush1.msra.mxu0 0.0
    %1200 = vmatprep.subr.mxu0 0.0
    %1201 = vmatpush1.msra.mxu0 0.0
    %1202 = vmatprep.subr.mxu0 0.0
    %1203 = vmatpush1.msra.mxu0 0.0
    %1204 = vmatprep.subr.mxu0 0.0
    %1205 = vmatpush1.msra.mxu0 0.0
    %1206 = vmatprep.subr.mxu0 0.0
    %1207 = vmatpush1.msra.mxu0 0.0
    %1208 = vmatprep.mubr.f32.mxu0 0.0
    %1209 = vmatmul.mubr.f32.gmra.mrb[0].mxu0 %v1142
    %v1210 = vpop.f32.mrb[0].mxu0
    %v1211 = vadd.f32 0.0, %v1210
    %v1212 = vpop.f32.mrb[0].mxu0
    %1213 = vdwg.mxu0
    %v1214 = vadd.f32 %v1143, %v1211
    %v1215 = vtanh.pop %v1214
    %v1216 = vld [vmem:[%s686] sm:$0xff]
    %1217 = vmatprep.subr.mxu0 0.0
    %1218 = vmatpush1.msra.mxu0 %v688
    %1219 = vmatprep.subr.mxu0 0.0
    %1220 = vmatpush1.msra.mxu0 %v689
    %1221 = vmatprep.subr.mxu0 0.0
    %1222 = vmatpush1.msra.mxu0 %v690
    %1223 = vmatprep.subr.mxu0 0.0
    %1224 = vmatpush1.msra.mxu0 %v691
    %1225 = vmatprep.subr.mxu0 0.0
    %1226 = vmatpush1.msra.mxu0 %v692
    %1227 = vmatprep.subr.mxu0 0.0
    %1228 = vmatpush1.msra.mxu0 %v693
    %1229 = vmatprep.subr.mxu0 0.0
    %1230 = vmatpush1.msra.mxu0 %v694
    %1231 = vmatprep.subr.mxu0 0.0
    %1232 = vmatpush1.msra.mxu0 %v695
    %1233 = vmatprep.subr.mxu0 0.0
    %1234 = vmatpush1.msra.mxu0 %v696
    %1235 = vmatprep.subr.mxu0 0.0
    %1236 = vmatpush1.msra.mxu0 %v697
    %1237 = vmatprep.subr.mxu0 0.0
    %1238 = vmatpush1.msra.mxu0 %v698
    %1239 = vmatprep.subr.mxu0 0.0
    %1240 = vmatpush1.msra.mxu0 %v699
    %1241 = vmatprep.subr.mxu0 0.0
    %1242 = vmatpush1.msra.mxu0 %v700
    %1243 = vmatprep.subr.mxu0 0.0
    %1244 = vmatpush1.msra.mxu0 %v701
    %1245 = vmatprep.subr.mxu0 0.0
    %1246 = vmatpush1.msra.mxu0 %v702
    %1247 = vmatprep.subr.mxu0 0.0
    %1248 = vmatpush1.msra.mxu0 %v703
    %1249 = vmatprep.subr.mxu0 0.0
    %1250 = vmatpush1.msra.mxu0 0.0
    %1251 = vmatprep.subr.mxu0 0.0
    %1252 = vmatpush1.msra.mxu0 0.0
    %1253 = vmatprep.subr.mxu0 0.0
    %1254 = vmatpush1.msra.mxu0 0.0
    %1255 = vmatprep.subr.mxu0 0.0
    %1256 = vmatpush1.msra.mxu0 0.0
    %1257 = vmatprep.subr.mxu0 0.0
    %1258 = vmatpush1.msra.mxu0 0.0
    %1259 = vmatprep.subr.mxu0 0.0
    %1260 = vmatpush1.msra.mxu0 0.0
    %1261 = vmatprep.subr.mxu0 0.0
    %1262 = vmatpush1.msra.mxu0 0.0
    %1263 = vmatprep.subr.mxu0 0.0
    %1264 = vmatpush1.msra.mxu0 0.0
    %1265 = vmatprep.subr.mxu0 0.0
    %1266 = vmatpush1.msra.mxu0 0.0
    %1267 = vmatprep.subr.mxu0 0.0
    %1268 = vmatpush1.msra.mxu0 0.0
    %1269 = vmatprep.subr.mxu0 0.0
    %1270 = vmatpush1.msra.mxu0 0.0
    %1271 = vmatprep.subr.mxu0 0.0
    %1272 = vmatpush1.msra.mxu0 0.0
    %1273 = vmatprep.subr.mxu0 0.0
    %1274 = vmatpush1.msra.mxu0 0.0
    %1275 = vmatprep.subr.mxu0 0.0
    %1276 = vmatpush1.msra.mxu0 0.0
    %1277 = vmatprep.subr.mxu0 0.0
    %1278 = vmatpush1.msra.mxu0 0.0
    %1279 = vmatprep.subr.mxu0 0.0
    %1280 = vmatpush1.msra.mxu0 0.0
    %1281 = vmatprep.mubr.f32.mxu0 0.0
    %1282 = vmatmul.mubr.f32.gmra.mrb[0].mxu0 %v1215
    %v1283 = vpop.f32.mrb[0].mxu0
    %v1284 = vadd.f32 0.0, %v1283
    %v1285 = vpop.f32.mrb[0].mxu0
    %1286 = vdwg.mxu0
    %v1287 = vadd.f32 %v1216, %v1284
    %v1288 = vtanh.pop %v1287
    %1289 = vst [vmem:[#allocation2] sm:$0xff] %v1288
    // Predicated region
    $region42: #{tpu_custom_call.1} parent=1 // pred_check
      %p1290 = pneg %p55
    $region43: #{tpu_custom_call.1} parent=1 // pred_check_branch
      %1292 = sbr.rel (%p1290) target = $region45
    $region44: #{tpu_custom_call.1} parent=1 // pred_region
      %v1293 = vld [vmem:[#allocation7] sm:$0xff]
      %v1294 = vld [vmem:[#allocation7 + $0x8] sm:$0xff]
      %v1295 = vld [vmem:[#allocation7 + $0x10] sm:$0xff]
      %v1296 = vld [vmem:[#allocation7 + $0x18] sm:$0xff]
      %v1297 = vld [vmem:[#allocation7 + $0x20] sm:$0xff]
      %v1298 = vld [vmem:[#allocation7 + $0x28] sm:$0xff]
      %v1299 = vld [vmem:[#allocation7 + $0x30] sm:$0xff]
      %v1300 = vld [vmem:[#allocation7 + $0x38] sm:$0xff]
      %v1301 = vld [vmem:[#allocation7 + $0x40] sm:$0xff]
      %v1302 = vld [vmem:[#allocation7 + $0x48] sm:$0xff]
      %v1303 = vld [vmem:[#allocation7 + $0x50] sm:$0xff]
      %v1304 = vld [vmem:[#allocation7 + $0x58] sm:$0xff]
      %v1305 = vld [vmem:[#allocation7 + $0x60] sm:$0xff]
      %v1306 = vld [vmem:[#allocation7 + $0x68] sm:$0xff]
      %v1307 = vld [vmem:[#allocation7 + $0x70] sm:$0xff]
      %v1308 = vld [vmem:[#allocation7 + $0x78] sm:$0xff]
      %v1309 = vld [vmem:[%s6] sm:$0x1]
      %v1311 = vlaneseq
      %v1312 = vshrl.u32 %v1311, 7
      %v1313 = vsub.s32 0, %v1312
      %v1314 = vrot.slane %v1309, %v1313
      %1316 = vmatprep.subr.mxu0 0.0
      %1317 = vmatpush1.msra.mxu0 %v1293
      %1318 = vmatprep.subr.mxu0 0.0
      %1319 = vmatpush1.msra.mxu0 %v1294
      %1320 = vmatprep.subr.mxu0 0.0
      %1321 = vmatpush1.msra.mxu0 %v1295
      %1322 = vmatprep.subr.mxu0 0.0
      %1323 = vmatpush1.msra.mxu0 %v1296
      %1324 = vmatprep.subr.mxu0 0.0
      %1325 = vmatpush1.msra.mxu0 %v1297
      %1326 = vmatprep.subr.mxu0 0.0
      %1327 = vmatpush1.msra.mxu0 %v1298
      %1328 = vmatprep.subr.mxu0 0.0
      %1329 = vmatpush1.msra.mxu0 %v1299
      %1330 = vmatprep.subr.mxu0 0.0
      %1331 = vmatpush1.msra.mxu0 %v1300
      %1332 = vmatprep.subr.mxu0 0.0
      %1333 = vmatpush1.msra.mxu0 %v1301
      %1334 = vmatprep.subr.mxu0 0.0
      %1335 = vmatpush1.msra.mxu0 %v1302
      %1336 = vmatprep.subr.mxu0 0.0
      %1337 = vmatpush1.msra.mxu0 %v1303
      %1338 = vmatprep.subr.mxu0 0.0
      %1339 = vmatpush1.msra.mxu0 %v1304
      %1340 = vmatprep.subr.mxu0 0.0
      %1341 = vmatpush1.msra.mxu0 %v1305
      %1342 = vmatprep.subr.mxu0 0.0
      %1343 = vmatpush1.msra.mxu0 %v1306
      %1344 = vmatprep.subr.mxu0 0.0
      %1345 = vmatpush1.msra.mxu0 %v1307
      %1346 = vmatprep.subr.mxu0 0.0
      %1347 = vmatpush1.msra.mxu0 %v1308
      %1348 = vmatprep.subr.mxu0 0.0
      %1349 = vmatpush1.msra.mxu0 0.0
      %1350 = vmatprep.subr.mxu0 0.0
      %1351 = vmatpush1.msra.mxu0 0.0
      %1352 = vmatprep.subr.mxu0 0.0
      %1353 = vmatpush1.msra.mxu0 0.0
      %1354 = vmatprep.subr.mxu0 0.0
      %1355 = vmatpush1.msra.mxu0 0.0
      %1356 = vmatprep.subr.mxu0 0.0
      %1357 = vmatpush1.msra.mxu0 0.0
      %1358 = vmatprep.subr.mxu0 0.0
      %1359 = vmatpush1.msra.mxu0 0.0
      %1360 = vmatprep.subr.mxu0 0.0
      %1361 = vmatpush1.msra.mxu0 0.0
      %1362 = vmatprep.subr.mxu0 0.0
      %1363 = vmatpush1.msra.mxu0 0.0
      %1364 = vmatprep.subr.mxu0 0.0
      %1365 = vmatpush1.msra.mxu0 0.0
      %1366 = vmatprep.subr.mxu0 0.0
      %1367 = vmatpush1.msra.mxu0 0.0
      %1368 = vmatprep.subr.mxu0 0.0
      %1369 = vmatpush1.msra.mxu0 0.0
      %1370 = vmatprep.subr.mxu0 0.0
      %1371 = vmatpush1.msra.mxu0 0.0
      %1372 = vmatprep.subr.mxu0 0.0
      %1373 = vmatpush1.msra.mxu0 0.0
      %1374 = vmatprep.subr.mxu0 0.0
      %1375 = vmatpush1.msra.mxu0 0.0
      %1376 = vmatprep.subr.mxu0 0.0
      %1377 = vmatpush1.msra.mxu0 0.0
      %1378 = vmatprep.subr.mxu0 0.0
      %1379 = vmatpush1.msra.mxu0 0.0
      %1380 = vmatprep.mubr.f32.mxu0 0.0
      %1381 = vmatmul.mubr.f32.gmra.mrb[0].mxu0 %v1288
      %v1382 = vpop.f32.mrb[0].mxu0
      %v1383 = vadd.f32 %v1314, %v1382
      %v1384 = vpop.f32.mrb[0].mxu0
      %1385 = vdwg.mxu0
      %v1386 = vxor.u32 %v1383, 2147483648
      %v1387 = vmul.f32 %v1386, 1.442695
      %v1388 = vpow.pop %v1387
      %v1389 = vadd.f32 %v1388, 1.0
      %v1390 = vrcp.pop %v1389
      %v1391 = vmul.f32 1.0, %v1390
      %1392 = vst [vmem:[#allocation9] sm:$0xff] %v1391
    $region45: #{tpu_custom_call.1} parent=1 // pred_fallthru
      _
    // Predicated region
    $region46: #{tpu_custom_call.1} parent=1 // pred_check
      _
    $region47: #{tpu_custom_call.1} parent=1 // pred_check_branch
      %1394 = sbr.rel (0) target = $region49
    $region48: #{tpu_custom_call.1} parent=1 // pred_region
      %s1396 = ssub.s32 128, 128
      %1397 = vsyncadd [#allocation6], %s1396
      %s1399 = sshll.u32 [#allocation9], 4
      %s1400 = int_to_ptr.vmem [resolvable:$true] %s1399
      %1402 = dma.vmem_to_hbm [thread:$0]  %s1400, 128, %s7, [#allocation6]
    $region49: #{tpu_custom_call.1} parent=1 // pred_fallthru
      _
    // Predicated region
    $region50: #{tpu_custom_call.1} parent=1 // pred_check
      _
    $region51: #{tpu_custom_call.1} parent=1 // pred_check_branch
      %1404 = sbr.rel (0) target = $region53
    $region52: #{tpu_custom_call.1} parent=1 // pred_region
      %1405 = dma.done [#allocation6], 128
    $region53: #{tpu_custom_call.1} parent=1 // pred_fallthru
      _
    %1406 = vsyncpa [#allocation5], 1
    %1407 = vsyncpa [#allocation8], 1
    %1408 = vsyncpa [#allocation6], 1

</llo_original>
